<compile_context>
chip_gen: v7x
topology: tpu7x:2x2x1
jax: 0.10.0
libtpu: 0.0.40
codegen_flags: <defaults>
</compile_context>

<pallas_src>
import jax
import jax.numpy as jnp
from jax.experimental import pallas as pl
from jax.experimental.pallas import tpu as pltpu

IN_DIM = 784
HID = 128
D1, D2, D3 = HID * 4, HID * 2, HID   # 512, 256, 128
NEG_SLOPE = 0.2
MAX_TM = 512                         # amortizes ~0.35 us/step grid overhead; VMEM is
                                     # still only a few MiB even on v5e's 16 MiB default.


def _leaky_relu(z):
    # max(z, 0.2*z) == LeakyReLU(0.2) for any real z when 0 < slope < 1.
    return jnp.maximum(z, NEG_SLOPE * z)


def disc_kernel(x_ref,
                w1_ref, b1_ref,
                w2_ref, b2_ref,
                w3_ref, b3_ref,
                w4t_ref, b4_ref,
                o_ref):
    """Fused 4-layer MLP on one (tm, 784) batch tile.

    The three big matmuls use bf16 operands with fp32 accumulation on the MXU;
    bias adds and LeakyReLU stay fp32 on the VPU. The final 128 -> 1 layer is a
    broadcast multiply + lane reduction (VPU/XLU), writing a (tm, 1) output.
    """
    x = x_ref[...].astype(jnp.bfloat16)                       # (tm, 784)

    h = jnp.dot(x, w1_ref[...], preferred_element_type=jnp.float32) + b1_ref[...]
    h = _leaky_relu(h)                                        # (tm, 512) f32

    h = jnp.dot(h.astype(jnp.bfloat16), w2_ref[...],
                preferred_element_type=jnp.float32) + b2_ref[...]
    h = _leaky_relu(h)                                        # (tm, 256) f32

    h = jnp.dot(h.astype(jnp.bfloat16), w3_ref[...],
                preferred_element_type=jnp.float32) + b3_ref[...]
    h = _leaky_relu(h)                                        # (tm, 128) f32

    logit = jnp.sum(h * w4t_ref[...], axis=-1, keepdims=True) + b4_ref[...]
    o_ref[...] = logit                                        # (tm, 1) f32


def _pick_tm(batch):
    """Batch tile: always gives >= 2 grid steps (so the 'parallel' axis can
    shard across both v7x TensorCores), multiple of 8 rows, capped at MAX_TM."""
    half = -(-batch // 2)                        # ceil(batch / 2)
    return min(MAX_TM, max(8, ((half + 7) // 8) * 8))


@jax.jit
def discriminator_forward(x, params):
    """x: (B, IN_DIM) float32. params: list of (W_(in,out), b_(1,out)), float32."""
    B = x.shape[0]
    (w1, b1), (w2, b2), (w3, b3), (w4, b4) = params

    tm = _pick_tm(B)
    n_tiles = pl.cdiv(B, tm)     # partial edge tile: reads padded, writes masked

    # Weights are tiny (~2.2 MB fp32); a one-shot bf16 cast keeps the resident
    # VMEM copies small. x itself is NOT touched in the wrapper.
    w1b = w1.astype(jnp.bfloat16)
    w2b = w2.astype(jnp.bfloat16)
    w3b = w3.astype(jnp.bfloat16)
    w4t = w4.reshape(1, D3)      # (1, 128) fp32 row for the VPU final layer

    flops = 2 * B * (IN_DIM * D1 + D1 * D2 + D2 * D3 + D3)
    bytes_accessed = (x.size * 4
                      + (w1b.size + w2b.size + w3b.size) * 2
                      + (D3 + D1 + D2 + D3 + 1) * 4
                      + B * 4)

    return pl.pallas_call(
        disc_kernel,
        out_shape=jax.ShapeDtypeStruct((B, 1), jnp.float32),
        grid=(n_tiles,),
        in_specs=[
            pl.BlockSpec((tm, IN_DIM), lambda i: (i, 0)),   # x tile (fp32, unpadded)
            pl.BlockSpec((IN_DIM, D1), lambda i: (0, 0)),   # w1 (resident)
            pl.BlockSpec((1, D1), lambda i: (0, 0)),        # b1
            pl.BlockSpec((D1, D2), lambda i: (0, 0)),       # w2
            pl.BlockSpec((1, D2), lambda i: (0, 0)),        # b2
            pl.BlockSpec((D2, D3), lambda i: (0, 0)),       # w3
            pl.BlockSpec((1, D3), lambda i: (0, 0)),        # b3
            pl.BlockSpec((1, D3), lambda i: (0, 0)),        # w4^T row
            pl.BlockSpec((1, 1), lambda i: (0, 0)),         # b4
        ],
        out_specs=pl.BlockSpec((tm, 1), lambda i: (i, 0)),
        compiler_params=pltpu.CompilerParams(
            dimension_semantics=("parallel",)),
        cost_estimate=pl.CostEstimate(
            flops=flops, transcendentals=0, bytes_accessed=bytes_accessed),
    )(x, w1b, b1, w2b, b2, w3b, b3, w4t, b4)


def init_params(key):
    """PyTorch nn.Linear default init: U(-1/sqrt(fan_in), 1/sqrt(fan_in))."""
    dims = [IN_DIM, D1, D2, D3, 1]
    params = []
    for i in range(len(dims) - 1):
        fan_in, fan_out = dims[i], dims[i + 1]
        key, kw, kb = jax.random.split(key, 3)
        bound = 1.0 / (fan_in ** 0.5)
        w = jax.random.uniform(kw, (fan_in, fan_out), jnp.float32, -bound, bound)
        b = jax.random.uniform(kb, (1, fan_out), jnp.float32, -bound, bound)
        params.append((w, b))
    return params


def reference_forward(x, params):
    """fp32 reference mirroring the PyTorch module."""
    h = x
    for i, (w, b) in enumerate(params):
        h = h @ w + b
        if i < len(params) - 1:
            h = jnp.where(h > 0, h, NEG_SLOPE * h)
    return h


if __name__ == "__main__":
    key = jax.random.PRNGKey(0)
    key, kx = jax.random.split(key)

    B = 32  # small demo batch -> tm = 16, two grid steps (exercises megacore path)
    x = jax.random.normal(kx, (B, IN_DIM), jnp.float32)  # flattened images
    params = init_params(key)

    out = jax.block_until_ready(discriminator_forward(x, params))
    ref = reference_forward(x, params)

    assert out.shape == (B, 1), out.shape
    # bf16 matmul operands (fp32 accumulation) vs. pure-fp32 reference.
    assert jnp.allclose(out, ref, atol=5e-2, rtol=5e-2), (
        f"max abs diff {jnp.max(jnp.abs(out - ref))}")

    print("KERNEL_OK")
</pallas_src>

<mosaic_0001>
module attributes {stable_mosaic.version = 11 : i64} {
  func.func @disc_kernel(%arg0: i32, %arg1: memref<16x784xf32, #tpu.memory_space<vmem>>, %arg2: memref<784x512xbf16, #tpu.memory_space<vmem>>, %arg3: memref<1x512xf32, #tpu.memory_space<vmem>>, %arg4: memref<512x256xbf16, #tpu.memory_space<vmem>>, %arg5: memref<1x256xf32, #tpu.memory_space<vmem>>, %arg6: memref<256x128xbf16, #tpu.memory_space<vmem>>, %arg7: memref<1x128xf32, #tpu.memory_space<vmem>>, %arg8: memref<1x128xf32, #tpu.memory_space<vmem>>, %arg9: memref<1x1xf32, #tpu.memory_space<vmem>>, %arg10: memref<16x1xf32, #tpu.memory_space<vmem>>) attributes {dimension_semantics = [#tpu.dimension_semantics<parallel>], iteration_bounds = array<i64: 2>, scalar_prefetch = 0 : i64, scratch_operands = 0 : i64, tpu.core_type = #tpu.core_type<tc>, window_params = [{transform_indices = @transform_0, window_bounds = array<i64: 16, 784>}, {pipeline_mode = #tpu.pipeline_mode<synchronous>, transform_indices = @transform_1, window_bounds = array<i64: 784, 512>}, {pipeline_mode = #tpu.pipeline_mode<synchronous>, transform_indices = @transform_2, window_bounds = array<i64: 1, 512>}, {pipeline_mode = #tpu.pipeline_mode<synchronous>, transform_indices = @transform_3, window_bounds = array<i64: 512, 256>}, {pipeline_mode = #tpu.pipeline_mode<synchronous>, transform_indices = @transform_4, window_bounds = array<i64: 1, 256>}, {pipeline_mode = #tpu.pipeline_mode<synchronous>, transform_indices = @transform_5, window_bounds = array<i64: 256, 128>}, {pipeline_mode = #tpu.pipeline_mode<synchronous>, transform_indices = @transform_6, window_bounds = array<i64: 1, 128>}, {pipeline_mode = #tpu.pipeline_mode<synchronous>, transform_indices = @transform_7, window_bounds = array<i64: 1, 128>}, {pipeline_mode = #tpu.pipeline_mode<synchronous>, transform_indices = @transform_8, window_bounds = array<i64: 1, 1>}, {transform_indices = @transform_9, window_bounds = array<i64: 16, 1>}]} {
    %c0 = arith.constant 0 : index
    %c0_0 = arith.constant 0 : index
    %0 = vector.load %arg1[%c0, %c0_0] : memref<16x784xf32, #tpu.memory_space<vmem>>, vector<16x784xf32>
    %1 = arith.truncf %0 : vector<16x784xf32> to vector<16x784xbf16>
    %c0_1 = arith.constant 0 : index
    %c0_2 = arith.constant 0 : index
    %2 = vector.load %arg2[%c0_1, %c0_2] : memref<784x512xbf16, #tpu.memory_space<vmem>>, vector<784x512xbf16>
    %cst = arith.constant dense<0.000000e+00> : vector<16x512xf32>
    %3 = tpu.matmul %1, %2, %cst {dimension_numbers = #tpu.dot_dimension_numbers<[1], [0], [0], [1], [0, 0, 1, 1], [], []>} : vector<16x784xbf16>, vector<784x512xbf16>, vector<16x512xf32> -> vector<16x512xf32>
    %c0_3 = arith.constant 0 : index
    %c0_4 = arith.constant 0 : index
    %4 = vector.load %arg3[%c0_3, %c0_4] : memref<1x512xf32, #tpu.memory_space<vmem>>, vector<1x512xf32>
    %5 = vector.broadcast %4 : vector<1x512xf32> to vector<16x512xf32>
    %6 = arith.addf %3, %5 : vector<16x512xf32>
    %cst_5 = arith.constant 2.000000e-01 : f32
    %7 = vector.broadcast %cst_5 : f32 to vector<16x512xf32>
    %8 = arith.mulf %7, %6 : vector<16x512xf32>
    %9 = arith.maximumf %6, %8 : vector<16x512xf32>
    %10 = arith.truncf %9 : vector<16x512xf32> to vector<16x512xbf16>
    %c0_6 = arith.constant 0 : index
    %c0_7 = arith.constant 0 : index
    %11 = vector.load %arg4[%c0_6, %c0_7] : memref<512x256xbf16, #tpu.memory_space<vmem>>, vector<512x256xbf16>
    %cst_8 = arith.constant dense<0.000000e+00> : vector<16x256xf32>
    %12 = tpu.matmul %10, %11, %cst_8 {dimension_numbers = #tpu.dot_dimension_numbers<[1], [0], [0], [1], [0, 0, 1, 1], [], []>} : vector<16x512xbf16>, vector<512x256xbf16>, vector<16x256xf32> -> vector<16x256xf32>
    %c0_9 = arith.constant 0 : index
    %c0_10 = arith.constant 0 : index
    %13 = vector.load %arg5[%c0_9, %c0_10] : memref<1x256xf32, #tpu.memory_space<vmem>>, vector<1x256xf32>
    %14 = vector.broadcast %13 : vector<1x256xf32> to vector<16x256xf32>
    %15 = arith.addf %12, %14 : vector<16x256xf32>
    %cst_11 = arith.constant 2.000000e-01 : f32
    %16 = vector.broadcast %cst_11 : f32 to vector<16x256xf32>
    %17 = arith.mulf %16, %15 : vector<16x256xf32>
    %18 = arith.maximumf %15, %17 : vector<16x256xf32>
    %19 = arith.truncf %18 : vector<16x256xf32> to vector<16x256xbf16>
    %c0_12 = arith.constant 0 : index
    %c0_13 = arith.constant 0 : index
    %20 = vector.load %arg6[%c0_12, %c0_13] : memref<256x128xbf16, #tpu.memory_space<vmem>>, vector<256x128xbf16>
    %cst_14 = arith.constant dense<0.000000e+00> : vector<16x128xf32>
    %21 = tpu.matmul %19, %20, %cst_14 {dimension_numbers = #tpu.dot_dimension_numbers<[1], [0], [0], [1], [0, 0, 1, 1], [], []>} : vector<16x256xbf16>, vector<256x128xbf16>, vector<16x128xf32> -> vector<16x128xf32>
    %c0_15 = arith.constant 0 : index
    %c0_16 = arith.constant 0 : index
    %22 = vector.load %arg7[%c0_15, %c0_16] : memref<1x128xf32, #tpu.memory_space<vmem>>, vector<1x128xf32>
    %23 = vector.broadcast %22 : vector<1x128xf32> to vector<16x128xf32>
    %24 = arith.addf %21, %23 : vector<16x128xf32>
    %cst_17 = arith.constant 2.000000e-01 : f32
    %25 = vector.broadcast %cst_17 : f32 to vector<16x128xf32>
    %26 = arith.mulf %25, %24 : vector<16x128xf32>
    %27 = arith.maximumf %24, %26 : vector<16x128xf32>
    %c0_18 = arith.constant 0 : index
    %c0_19 = arith.constant 0 : index
    %28 = vector.load %arg8[%c0_18, %c0_19] : memref<1x128xf32, #tpu.memory_space<vmem>>, vector<1x128xf32>
    %29 = vector.broadcast %28 : vector<1x128xf32> to vector<16x128xf32>
    %30 = arith.mulf %27, %29 : vector<16x128xf32>
    %cst_20 = arith.constant dense<0.000000e+00> : vector<16xf32>
    %31 = vector.multi_reduction <add>, %30, %cst_20 [1] : vector<16x128xf32> to vector<16xf32>
    %32 = vector.shape_cast %31 : vector<16xf32> to vector<16x1xf32>
    %c0_21 = arith.constant 0 : index
    %c0_22 = arith.constant 0 : index
    %33 = vector.load %arg9[%c0_21, %c0_22] : memref<1x1xf32, #tpu.memory_space<vmem>>, vector<1x1xf32>
    %34 = vector.broadcast %33 : vector<1x1xf32> to vector<16x1xf32>
    %35 = arith.addf %32, %34 : vector<16x1xf32>
    %c0_23 = arith.constant 0 : index
    %c0_24 = arith.constant 0 : index
    %36 = vector.load %arg10[%c0_23, %c0_24] : memref<16x1xf32, #tpu.memory_space<vmem>>, vector<16x1xf32>
    tpu.vector_store %arg10[%c0_23, %c0_24], %35 {strides = array<i32>} : memref<16x1xf32, #tpu.memory_space<vmem>>, vector<16x1xf32>,
    return
  }
  func.func @transform_0(%arg0: i32) -> (i32, i32) {
    %c0_i32 = arith.constant 0 : i32
    %c0_i32_0 = arith.constant 0 : i32
    return %arg0, %c0_i32 : i32, i32
  }
  func.func @transform_1(%arg0: i32) -> (i32, i32) {
    %c0_i32 = arith.constant 0 : i32
    %c0_i32_0 = arith.constant 0 : i32
    %c0_i32_1 = arith.constant 0 : i32
    return %c0_i32, %c0_i32_0 : i32, i32
  }
  func.func @transform_2(%arg0: i32) -> (i32, i32) {
    %c0_i32 = arith.constant 0 : i32
    %c0_i32_0 = arith.constant 0 : i32
    %c0_i32_1 = arith.constant 0 : i32
    return %c0_i32, %c0_i32_0 : i32, i32
  }
  func.func @transform_3(%arg0: i32) -> (i32, i32) {
    %c0_i32 = arith.constant 0 : i32
    %c0_i32_0 = arith.constant 0 : i32
    %c0_i32_1 = arith.constant 0 : i32
    return %c0_i32, %c0_i32_0 : i32, i32
  }
  func.func @transform_4(%arg0: i32) -> (i32, i32) {
    %c0_i32 = arith.constant 0 : i32
    %c0_i32_0 = arith.constant 0 : i32
    %c0_i32_1 = arith.constant 0 : i32
    return %c0_i32, %c0_i32_0 : i32, i32
  }
  func.func @transform_5(%arg0: i32) -> (i32, i32) {
    %c0_i32 = arith.constant 0 : i32
    %c0_i32_0 = arith.constant 0 : i32
    %c0_i32_1 = arith.constant 0 : i32
    return %c0_i32, %c0_i32_0 : i32, i32
  }
  func.func @transform_6(%arg0: i32) -> (i32, i32) {
    %c0_i32 = arith.constant 0 : i32
    %c0_i32_0 = arith.constant 0 : i32
    %c0_i32_1 = arith.constant 0 : i32
    return %c0_i32, %c0_i32_0 : i32, i32
  }
  func.func @transform_7(%arg0: i32) -> (i32, i32) {
    %c0_i32 = arith.constant 0 : i32
    %c0_i32_0 = arith.constant 0 : i32
    %c0_i32_1 = arith.constant 0 : i32
    return %c0_i32, %c0_i32_0 : i32, i32
  }
  func.func @transform_8(%arg0: i32) -> (i32, i32) {
    %c0_i32 = arith.constant 0 : i32
    %c0_i32_0 = arith.constant 0 : i32
    %c0_i32_1 = arith.constant 0 : i32
    return %c0_i32, %c0_i32_0 : i32, i32
  }
  func.func @transform_9(%arg0: i32) -> (i32, i32) {
    %c0_i32 = arith.constant 0 : i32
    %c0_i32_0 = arith.constant 0 : i32
    return %arg0, %c0_i32 : i32, i32
  }
}

</mosaic_0001>

<llo_original>
// kernel: discriminator_forward.1
$region0: #{discriminator_forward.1}
  #allocation0 [shape = 'u32[]', space=smem, size = 0x4, offset = 0x4, fixed_abs, tag = 'smem constant byte address 0x4 - core index']
  #allocation1 [shape = 'u32[144,128]{1,0:T(1,128)}', space=vmem, size = 0x12000, scoped, tag = 'internal scratch']
  #allocation2 [shape = 'f32[1,1]{1,0:T(1,128)S(1)}', space=vmem, size = 0x200, scoped, tag = 'scoped memory for discriminator_forward.1']
  %s0 = inlined_call_operand.vmem [shape: f32[32,784], index: 0, kind: input, shape index: {}]
  %s1 = inlined_call_operand.vmem [shape: bf16[784,512], index: 1, kind: input, shape index: {}]
  %s2 = inlined_call_operand.vmem [shape: f32[1,512], index: 2, kind: input, shape index: {}]
  %s3 = inlined_call_operand.vmem [shape: bf16[512,256], index: 3, kind: input, shape index: {}]
  %s4 = inlined_call_operand.vmem [shape: f32[1,256], index: 4, kind: input, shape index: {}]
  %s5 = inlined_call_operand.vmem [shape: bf16[256,128], index: 5, kind: input, shape index: {}]
  %s6 = inlined_call_operand.vmem [shape: f32[1,128], index: 6, kind: input, shape index: {}]
  %s7 = inlined_call_operand.vmem [shape: f32[1,128], index: 7, kind: input, shape index: {}]
  %s8 = inlined_call_operand.<no memory space> [shape: f32[1,1], index: 8, kind: input, shape index: {}]
  %s9 = inlined_call_operand.vmem [shape: f32[32,1], index: 9, kind: output, shape index: {}]
  %s10 = sld [smem:[#allocation0]]
  $region69: #{discriminator_forward.1} parent=0
    _
  %s12 = ssub.s32 1, %s10
  %s13 = scalar_select 0, %s12, %s10
  %v14 = vstv %s8
  %15 = vst [vmem:[#allocation2] sm:$0x1] %v14
  loop: start=0, step=1, limit=4
  $region2: #{discriminator_forward.1} parent=0 // loop_pre_header
    _
  $region3: #{discriminator_forward.1} parent=0 // loop_header
    %s17 = sphi 0, %s21
    %p18 = scmp.ge.s32.totalorder %s17, 4
    %s27 = sphi 0, %s29
    %s30 = sphi 0, %s27
    %s31 = sphi 0, %s30
    %s47 = sphi 0, %s31
    %s51 = sphi 0, %s51
    %s53 = sphi 0, %s51
    %s54 = sphi 0, %s53
    %s68 = sphi 0, %s54
    %s72 = sphi 0, %s72
    %s74 = sphi 0, %s72
    %s75 = sphi 0, %s74
    %s89 = sphi 0, %s75
    %s93 = sphi 0, %s93
    %s95 = sphi 0, %s93
    %s96 = sphi 0, %s95
    %s110 = sphi 0, %s96
    %s114 = sphi 0, %s114
    %s116 = sphi 0, %s114
    %s117 = sphi 0, %s116
    %s131 = sphi 0, %s117
    %s135 = sphi 0, %s135
    %s137 = sphi 0, %s135
    %s138 = sphi 0, %s137
    %s152 = sphi 0, %s138
    %s156 = sphi 0, %s156
    %s158 = sphi 0, %s156
    %s159 = sphi 0, %s158
    %s173 = sphi 0, %s159
    %s177 = sphi 0, %s177
    %s179 = sphi 0, %s177
    %s180 = sphi 0, %s179
    %s194 = sphi 0, %s180
    %s198 = sphi 0, %s198
    %s200 = sphi 0, %s198
    %s201 = sphi 0, %s200
    %s215 = sphi 0, %s201
    %s221 = sphi 0, %s223
    %s224 = sphi 0, %s221
    %s225 = sphi 0, %s224
    %s241 = sphi 0, %s225
  $region4: #{discriminator_forward.1} parent=0 // loop_header_branch
    %20 = sbr.rel (%p18) target = $region8
  $region5: #{discriminator_forward.1} parent=0 // loop_body
    %s22 = ssub.s32 %s17, 1
    %s23 = ssub.s32 %s17, 2
    %s24 = sadd.s32 %s17, 1
    %s25 = ssub.s32 %s17, %s24
    %p26 = scmp.eq.s32.totalorder %s25, 0
    %s28 = sadd.s32 %s27, 1
    %s29 = scalar_select %p26, %s27, %s28
    %p32 = pneg %p26
    %p33 = scmp.eq.s32.totalorder %s17, 1
    %p34 = por %p32, %p33
    %p35 = scmp.ne.s32.totalorder %s27, %s30
    %p36 = scmp.eq.s32.totalorder %s17, 0
    %p37 = por %p35, %p36
    %p38 = scmp.ne.s32.totalorder %s27, %s30
    %p39 = scmp.eq.s32.totalorder %s22, 1
    %p40 = por %p38, %p39
    %p41 = scmp.ne.s32.totalorder %s30, %s31
    %p42 = scmp.eq.s32.totalorder %s22, 0
    %p43 = por %p41, %p42
    %p44 = scmp.ne.s32.totalorder %s30, %s31
    %p45 = scmp.eq.s32.totalorder %s23, 1
    %p46 = por %p44, %p45
    %p48 = scmp.ne.s32.totalorder %s31, %s47
    %p49 = scmp.eq.s32.totalorder %s23, 0
    %p50 = por %p48, %p49
    %s52 = sadd.s32 %s51, 1
    %p55 = scmp.eq.s32.totalorder %s17, 1
    %p56 = scmp.ne.s32.totalorder %s51, %s53
    %p57 = scmp.eq.s32.totalorder %s17, 0
    %p58 = por %p56, %p57
    %p59 = scmp.ne.s32.totalorder %s51, %s53
    %p60 = scmp.eq.s32.totalorder %s22, 1
    %p61 = por %p59, %p60
    %p62 = scmp.ne.s32.totalorder %s53, %s54
    %p63 = scmp.eq.s32.totalorder %s22, 0
    %p64 = por %p62, %p63
    %p65 = scmp.ne.s32.totalorder %s53, %s54
    %p66 = scmp.eq.s32.totalorder %s23, 1
    %p67 = por %p65, %p66
    %p69 = scmp.ne.s32.totalorder %s54, %s68
    %p70 = scmp.eq.s32.totalorder %s23, 0
    %p71 = por %p69, %p70
    %s73 = sadd.s32 %s72, 1
    %p76 = scmp.eq.s32.totalorder %s17, 1
    %p77 = scmp.ne.s32.totalorder %s72, %s74
    %p78 = scmp.eq.s32.totalorder %s17, 0
    %p79 = por %p77, %p78
    %p80 = scmp.ne.s32.totalorder %s72, %s74
    %p81 = scmp.eq.s32.totalorder %s22, 1
    %p82 = por %p80, %p81
    %p83 = scmp.ne.s32.totalorder %s74, %s75
    %p84 = scmp.eq.s32.totalorder %s22, 0
    %p85 = por %p83, %p84
    %p86 = scmp.ne.s32.totalorder %s74, %s75
    %p87 = scmp.eq.s32.totalorder %s23, 1
    %p88 = por %p86, %p87
    %p90 = scmp.ne.s32.totalorder %s75, %s89
    %p91 = scmp.eq.s32.totalorder %s23, 0
    %p92 = por %p90, %p91
    %s94 = sadd.s32 %s93, 1
    %p97 = scmp.eq.s32.totalorder %s17, 1
    %p98 = scmp.ne.s32.totalorder %s93, %s95
    %p99 = scmp.eq.s32.totalorder %s17, 0
    %p100 = por %p98, %p99
    %p101 = scmp.ne.s32.totalorder %s93, %s95
    %p102 = scmp.eq.s32.totalorder %s22, 1
    %p103 = por %p101, %p102
    %p104 = scmp.ne.s32.totalorder %s95, %s96
    %p105 = scmp.eq.s32.totalorder %s22, 0
    %p106 = por %p104, %p105
    %p107 = scmp.ne.s32.totalorder %s95, %s96
    %p108 = scmp.eq.s32.totalorder %s23, 1
    %p109 = por %p107, %p108
    %p111 = scmp.ne.s32.totalorder %s96, %s110
    %p112 = scmp.eq.s32.totalorder %s23, 0
    %p113 = por %p111, %p112
    %s115 = sadd.s32 %s114, 1
    %p118 = scmp.eq.s32.totalorder %s17, 1
    %p119 = scmp.ne.s32.totalorder %s114, %s116
    %p120 = scmp.eq.s32.totalorder %s17, 0
    %p121 = por %p119, %p120
    %p122 = scmp.ne.s32.totalorder %s114, %s116
    %p123 = scmp.eq.s32.totalorder %s22, 1
    %p124 = por %p122, %p123
    %p125 = scmp.ne.s32.totalorder %s116, %s117
    %p126 = scmp.eq.s32.totalorder %s22, 0
    %p127 = por %p125, %p126
    %p128 = scmp.ne.s32.totalorder %s116, %s117
    %p129 = scmp.eq.s32.totalorder %s23, 1
    %p130 = por %p128, %p129
    %p132 = scmp.ne.s32.totalorder %s117, %s131
    %p133 = scmp.eq.s32.totalorder %s23, 0
    %p134 = por %p132, %p133
    %s136 = sadd.s32 %s135, 1
    %p139 = scmp.eq.s32.totalorder %s17, 1
    %p140 = scmp.ne.s32.totalorder %s135, %s137
    %p141 = scmp.eq.s32.totalorder %s17, 0
    %p142 = por %p140, %p141
    %p143 = scmp.ne.s32.totalorder %s135, %s137
    %p144 = scmp.eq.s32.totalorder %s22, 1
    %p145 = por %p143, %p144
    %p146 = scmp.ne.s32.totalorder %s137, %s138
    %p147 = scmp.eq.s32.totalorder %s22, 0
    %p148 = por %p146, %p147
    %p149 = scmp.ne.s32.totalorder %s137, %s138
    %p150 = scmp.eq.s32.totalorder %s23, 1
    %p151 = por %p149, %p150
    %p153 = scmp.ne.s32.totalorder %s138, %s152
    %p154 = scmp.eq.s32.totalorder %s23, 0
    %p155 = por %p153, %p154
    %s157 = sadd.s32 %s156, 1
    %p160 = scmp.eq.s32.totalorder %s17, 1
    %p161 = scmp.ne.s32.totalorder %s156, %s158
    %p162 = scmp.eq.s32.totalorder %s17, 0
    %p163 = por %p161, %p162
    %p164 = scmp.ne.s32.totalorder %s156, %s158
    %p165 = scmp.eq.s32.totalorder %s22, 1
    %p166 = por %p164, %p165
    %p167 = scmp.ne.s32.totalorder %s158, %s159
    %p168 = scmp.eq.s32.totalorder %s22, 0
    %p169 = por %p167, %p168
    %p170 = scmp.ne.s32.totalorder %s158, %s159
    %p171 = scmp.eq.s32.totalorder %s23, 1
    %p172 = por %p170, %p171
    %p174 = scmp.ne.s32.totalorder %s159, %s173
    %p175 = scmp.eq.s32.totalorder %s23, 0
    %p176 = por %p174, %p175
    %s178 = sadd.s32 %s177, 1
    %p181 = scmp.eq.s32.totalorder %s17, 1
    %p182 = scmp.ne.s32.totalorder %s177, %s179
    %p183 = scmp.eq.s32.totalorder %s17, 0
    %p184 = por %p182, %p183
    %p185 = scmp.ne.s32.totalorder %s177, %s179
    %p186 = scmp.eq.s32.totalorder %s22, 1
    %p187 = por %p185, %p186
    %p188 = scmp.ne.s32.totalorder %s179, %s180
    %p189 = scmp.eq.s32.totalorder %s22, 0
    %p190 = por %p188, %p189
    %p191 = scmp.ne.s32.totalorder %s179, %s180
    %p192 = scmp.eq.s32.totalorder %s23, 1
    %p193 = por %p191, %p192
    %p195 = scmp.ne.s32.totalorder %s180, %s194
    %p196 = scmp.eq.s32.totalorder %s23, 0
    %p197 = por %p195, %p196
    %s199 = sadd.s32 %s198, 1
    %p202 = scmp.eq.s32.totalorder %s17, 1
    %p203 = scmp.ne.s32.totalorder %s198, %s200
    %p204 = scmp.eq.s32.totalorder %s17, 0
    %p205 = por %p203, %p204
    %p206 = scmp.ne.s32.totalorder %s198, %s200
    %p207 = scmp.eq.s32.totalorder %s22, 1
    %p208 = por %p206, %p207
    %p209 = scmp.ne.s32.totalorder %s200, %s201
    %p210 = scmp.eq.s32.totalorder %s22, 0
    %p211 = por %p209, %p210
    %p212 = scmp.ne.s32.totalorder %s200, %s201
    %p213 = scmp.eq.s32.totalorder %s23, 1
    %p214 = por %p212, %p213
    %p216 = scmp.ne.s32.totalorder %s201, %s215
    %p217 = scmp.eq.s32.totalorder %s23, 0
    %p218 = por %p216, %p217
    %s219 = ssub.s32 %s17, %s24
    %p220 = scmp.eq.s32.totalorder %s219, 0
    %s222 = sadd.s32 %s221, 1
    %s223 = scalar_select %p220, %s221, %s222
    %p226 = pneg %p220
    %p227 = scmp.eq.s32.totalorder %s17, 1
    %p228 = por %p226, %p227
    %p229 = scmp.ne.s32.totalorder %s221, %s224
    %p230 = scmp.eq.s32.totalorder %s17, 0
    %p231 = por %p229, %p230
    %p232 = scmp.ne.s32.totalorder %s221, %s224
    %p233 = scmp.eq.s32.totalorder %s22, 1
    %p234 = por %p232, %p233
    %p235 = scmp.ne.s32.totalorder %s224, %s225
    %p236 = scmp.eq.s32.totalorder %s22, 0
    %p237 = por %p235, %p236
    %p238 = scmp.ne.s32.totalorder %s224, %s225
    %p239 = scmp.eq.s32.totalorder %s23, 1
    %p240 = por %p238, %p239
    %p242 = scmp.ne.s32.totalorder %s225, %s241
    %p243 = scmp.eq.s32.totalorder %s23, 0
    %p244 = por %p242, %p243
    %p245 = scmp.le.s32.totalorder 1, %s17
    %p246 = scmp.lt.s32.totalorder %s17, 3
    %p247 = pnand %p245, %p246
    %p248 = pneg %p247
    // Predicated region
    $region9: #{discriminator_forward.1} parent=5 // pred_check
      _
    $region10: #{discriminator_forward.1} parent=5 // pred_check_branch
      %250 = sbr.rel (%p247) target = $region12
    $region11: #{discriminator_forward.1} parent=5 // pred_region
      %s251 = ssub.s32 %s17, 1
      // Predicated region
      $region13: #{discriminator_forward.1} parent=11 // pred_check
        %p252 = pneg %p64
      $region14: #{discriminator_forward.1} parent=11 // pred_check_branch
        %254 = sbr.rel (%p252) target = $region16
      $region15: #{discriminator_forward.1} parent=11 // pred_region
        _
      $region16: #{discriminator_forward.1} parent=11 // pred_fallthru
        _
      // Predicated region
      $region17: #{discriminator_forward.1} parent=11 // pred_check
        %p255 = pneg %p85
      $region18: #{discriminator_forward.1} parent=11 // pred_check_branch
        %257 = sbr.rel (%p255) target = $region20
      $region19: #{discriminator_forward.1} parent=11 // pred_region
        _
      $region20: #{discriminator_forward.1} parent=11 // pred_fallthru
        _
      // Predicated region
      $region21: #{discriminator_forward.1} parent=11 // pred_check
        %p258 = pneg %p106
      $region22: #{discriminator_forward.1} parent=11 // pred_check_branch
        %260 = sbr.rel (%p258) target = $region24
      $region23: #{discriminator_forward.1} parent=11 // pred_region
        _
      $region24: #{discriminator_forward.1} parent=11 // pred_fallthru
        _
      // Predicated region
      $region25: #{discriminator_forward.1} parent=11 // pred_check
        %p261 = pneg %p127
      $region26: #{discriminator_forward.1} parent=11 // pred_check_branch
        %263 = sbr.rel (%p261) target = $region28
      $region27: #{discriminator_forward.1} parent=11 // pred_region
        _
      $region28: #{discriminator_forward.1} parent=11 // pred_fallthru
        _
      // Predicated region
      $region29: #{discriminator_forward.1} parent=11 // pred_check
        %p264 = pneg %p148
      $region30: #{discriminator_forward.1} parent=11 // pred_check_branch
        %266 = sbr.rel (%p264) target = $region32
      $region31: #{discriminator_forward.1} parent=11 // pred_region
        _
      $region32: #{discriminator_forward.1} parent=11 // pred_fallthru
        _
      // Predicated region
      $region33: #{discriminator_forward.1} parent=11 // pred_check
        %p267 = pneg %p169
      $region34: #{discriminator_forward.1} parent=11 // pred_check_branch
        %269 = sbr.rel (%p267) target = $region36
      $region35: #{discriminator_forward.1} parent=11 // pred_region
        _
      $region36: #{discriminator_forward.1} parent=11 // pred_fallthru
        _
      // Predicated region
      $region37: #{discriminator_forward.1} parent=11 // pred_check
        %p270 = pneg %p190
      $region38: #{discriminator_forward.1} parent=11 // pred_check_branch
        %272 = sbr.rel (%p270) target = $region40
      $region39: #{discriminator_forward.1} parent=11 // pred_region
        _
      $region40: #{discriminator_forward.1} parent=11 // pred_fallthru
        _
      // Predicated region
      $region41: #{discriminator_forward.1} parent=11 // pred_check
        %p273 = pneg %p211
      $region42: #{discriminator_forward.1} parent=11 // pred_check_branch
        %275 = sbr.rel (%p273) target = $region44
      $region43: #{discriminator_forward.1} parent=11 // pred_region
        _
      $region44: #{discriminator_forward.1} parent=11 // pred_fallthru
        _
    $region12: #{discriminator_forward.1} parent=5 // pred_fallthru
      _
    %p276 = scmp.lt.s32.totalorder %s17, 2
    // Predicated region
    $region45: #{discriminator_forward.1} parent=5 // pred_check
      %p277 = pneg %p276
    $region46: #{discriminator_forward.1} parent=5 // pred_check_branch
      %279 = sbr.rel (%p277) target = $region48
    $region47: #{discriminator_forward.1} parent=5 // pred_region
      // Predicated region
      $region49: #{discriminator_forward.1} parent=47 // pred_check
        %p280 = pneg %p37
      $region50: #{discriminator_forward.1} parent=47 // pred_check_branch
        %282 = sbr.rel (%p280) target = $region52
      $region51: #{discriminator_forward.1} parent=47 // pred_region
        %s283 = smul.u32 2, %s17
        %p284 = scmp.lt.s32.totalorder %s283, 3
        %s285 = scalar_select %p284, %s283, 3
        %s286 = smul.addr %s285, 7
        %s287 = smul.addr %s286, 8
        %s288 = scalar_lea.vmem %s0, %s287
        %s289 = smul.u32 2, %s17
      $region52: #{discriminator_forward.1} parent=47 // pred_fallthru
        _
    $region48: #{discriminator_forward.1} parent=5 // pred_fallthru
      _
    %p290 = scmp.le.s32.totalorder 1, %s17
    %p291 = scmp.lt.s32.totalorder %s17, 3
    %p292 = pnand %p290, %p291
    %p293 = pneg %p292
    // Predicated region
    $region53: #{discriminator_forward.1} parent=5 // pred_check
      _
    $region54: #{discriminator_forward.1} parent=5 // pred_check_branch
      %295 = sbr.rel (%p292) target = $region56
    $region55: #{discriminator_forward.1} parent=5 // pred_region
      %s296 = ssub.s32 %s17, 1
      %s297 = smul.u32 2, %s22
      %p298 = scmp.lt.s32.totalorder %s297, 3
      %s299 = scalar_select %p298, %s297, 3
      %s300 = smul.addr %s299, 7
      %s301 = smul.addr %s300, 8
      %s302 = scalar_lea.vmem %s0, %s301
      %p303 = pneg %p43
      %p304 = pneg %p40
      %p305 = pneg %p64
      %p306 = pneg %p61
      %p307 = pneg %p85
      %p308 = pneg %p82
      %p309 = pneg %p106
      %p310 = pneg %p103
      %p311 = pneg %p127
      %p312 = pneg %p124
      %p313 = pneg %p148
      %p314 = pneg %p145
      %p315 = pneg %p169
      %p316 = pneg %p166
      %p317 = pneg %p190
      %p318 = pneg %p187
      %p319 = pneg %p211
      %p320 = pneg %p208
      %p321 = pneg %p237
      %p322 = pneg %p234
      %s323 = smul.u32 2, %s22
      %p324 = scmp.lt.s32.totalorder %s323, 3
      %s325 = scalar_select %p324, %s323, 3
      %s326 = smul.addr %s325, 8
      %s327 = scalar_lea.vmem %s9, %s326
      %s328 = smul.u32 2, %s22
      %p329 = scmp.lt.s32.totalorder %s328, 3
      %s330 = scalar_select %p329, %s328, 3
      %s331 = smul.addr %s330, 7
      %s332 = smul.addr %s331, 8
      %s333 = scalar_lea.vmem %s0, %s332
      %s334 = smul.u32 2, %s22
      %s335 = smul.u32 2, %s22
      %p336 = scmp.lt.s32.totalorder %s335, 3
      %s337 = scalar_select %p336, %s335, 3
      %s338 = smul.addr %s337, 8
      %s339 = scalar_lea.vmem %s9, %s338
      %s340 = smul.u32 2, %s22
      %v342 = vld [vmem:[%s333] sm:$0xff]
      %v343 = vld [vmem:[%s333 + $0x8] sm:$0xff]
      %v344 = vld [vmem:[%s333 + $0x10] sm:$0xff]
      %v345 = vld [vmem:[%s333 + $0x18] sm:$0xff]
      %v346 = vld [vmem:[%s333 + $0x20] sm:$0xff]
      %v347 = vld [vmem:[%s333 + $0x28] sm:$0xff]
      %v348 = vld [vmem:[%s333 + $0x30] sm:$0xff]
      %v349 = vld [vmem:[%s333 + $0x38] sm:$0xff]
      %v350 = vld [vmem:[%s333 + $0x40] sm:$0xff]
      %v351 = vld [vmem:[%s333 + $0x48] sm:$0xff]
      %v352 = vld [vmem:[%s333 + $0x50] sm:$0xff]
      %v353 = vld [vmem:[%s333 + $0x58] sm:$0xff]
      %v354 = vld [vmem:[%s333 + $0x60] sm:$0xff]
      %v355 = vld [vmem:[%s333 + $0x68] sm:$0xff]
      %v356 = vpack.c.bf16 %v349, %v342
      %v357 = vpack.c.bf16 %v350, %v343
      %v358 = vpack.c.bf16 %v351, %v344
      %v359 = vpack.c.bf16 %v352, %v345
      %v360 = vpack.c.bf16 %v353, %v346
      %v361 = vpack.c.bf16 %v354, %v347
      %v362 = vpack.c.bf16 %v355, %v348
      %v363 = vld [vmem:[%s1] sm:$0xff]
      %v364 = vld [vmem:[%s1 + $0x8] sm:$0xff]
      %v365 = vld [vmem:[%s1 + $0x10] sm:$0xff]
      %v366 = vld [vmem:[%s1 + $0x18] sm:$0xff]
      %v367 = vld [vmem:[%s1 + $0x20] sm:$0xff]
      %v368 = vld [vmem:[%s1 + $0x28] sm:$0xff]
      %v369 = vld [vmem:[%s1 + $0x30] sm:$0xff]
      %v370 = vld [vmem:[%s1 + $0x38] sm:$0xff]
      %v371 = vld [vmem:[%s1 + $0x40] sm:$0xff]
      %v372 = vld [vmem:[%s1 + $0x48] sm:$0xff]
      %v373 = vld [vmem:[%s1 + $0x50] sm:$0xff]
      %v374 = vld [vmem:[%s1 + $0x58] sm:$0xff]
      %v375 = vld [vmem:[%s1 + $0x60] sm:$0xff]
      %v376 = vld [vmem:[%s1 + $0x68] sm:$0xff]
      %v377 = vld [vmem:[%s1 + $0x70] sm:$0xff]
      %v378 = vld [vmem:[%s1 + $0x78] sm:$0xff]
      %v379 = vld [vmem:[%s1 + $0x80] sm:$0xff]
      %v380 = vld [vmem:[%s1 + $0x88] sm:$0xff]
      %v381 = vld [vmem:[%s1 + $0x90] sm:$0xff]
      %v382 = vld [vmem:[%s1 + $0x98] sm:$0xff]
      %v383 = vld [vmem:[%s1 + $0xa0] sm:$0xff]
      %v384 = vld [vmem:[%s1 + $0xa8] sm:$0xff]
      %v385 = vld [vmem:[%s1 + $0xb0] sm:$0xff]
      %v386 = vld [vmem:[%s1 + $0xb8] sm:$0xff]
      %v387 = vld [vmem:[%s1 + $0xc0] sm:$0xff]
      %v388 = vld [vmem:[%s1 + $0xc8] sm:$0xff]
      %v389 = vld [vmem:[%s1 + $0xd0] sm:$0xff]
      %v390 = vld [vmem:[%s1 + $0xd8] sm:$0xff]
      %v391 = vld [vmem:[%s1 + $0xe0] sm:$0xff]
      %v392 = vld [vmem:[%s1 + $0xe8] sm:$0xff]
      %v393 = vld [vmem:[%s1 + $0xf0] sm:$0xff]
      %v394 = vld [vmem:[%s1 + $0xf8] sm:$0xff]
      %v395 = vld [vmem:[%s1 + $0x100] sm:$0xff]
      %v396 = vld [vmem:[%s1 + $0x108] sm:$0xff]
      %v397 = vld [vmem:[%s1 + $0x110] sm:$0xff]
      %v398 = vld [vmem:[%s1 + $0x118] sm:$0xff]
      %v399 = vld [vmem:[%s1 + $0x120] sm:$0xff]
      %v400 = vld [vmem:[%s1 + $0x128] sm:$0xff]
      %v401 = vld [vmem:[%s1 + $0x130] sm:$0xff]
      %v402 = vld [vmem:[%s1 + $0x138] sm:$0xff]
      %v403 = vld [vmem:[%s1 + $0x140] sm:$0xff]
      %v404 = vld [vmem:[%s1 + $0x148] sm:$0xff]
      %v405 = vld [vmem:[%s1 + $0x150] sm:$0xff]
      %v406 = vld [vmem:[%s1 + $0x158] sm:$0xff]
      %v407 = vld [vmem:[%s1 + $0x160] sm:$0xff]
      %v408 = vld [vmem:[%s1 + $0x168] sm:$0xff]
      %v409 = vld [vmem:[%s1 + $0x170] sm:$0xff]
      %v410 = vld [vmem:[%s1 + $0x178] sm:$0xff]
      %v411 = vld [vmem:[%s1 + $0x180] sm:$0xff]
      %v412 = vld [vmem:[%s1 + $0x188] sm:$0xff]
      %v413 = vld [vmem:[%s1 + $0x190] sm:$0xff]
      %v414 = vld [vmem:[%s1 + $0x198] sm:$0xff]
      %v415 = vld [vmem:[%s1 + $0x1a0] sm:$0xff]
      %v416 = vld [vmem:[%s1 + $0x1a8] sm:$0xff]
      %v417 = vld [vmem:[%s1 + $0x1b0] sm:$0xff]
      %v418 = vld [vmem:[%s1 + $0x1b8] sm:$0xff]
      %v419 = vld [vmem:[%s1 + $0x1c0] sm:$0xff]
      %v420 = vld [vmem:[%s1 + $0x1c8] sm:$0xff]
      %v421 = vld [vmem:[%s1 + $0x1d0] sm:$0xff]
      %v422 = vld [vmem:[%s1 + $0x1d8] sm:$0xff]
      %v423 = vld [vmem:[%s1 + $0x1e0] sm:$0xff]
      %v424 = vld [vmem:[%s1 + $0x1e8] sm:$0xff]
      %v425 = vld [vmem:[%s1 + $0x1f0] sm:$0xff]
      %v426 = vld [vmem:[%s1 + $0x1f8] sm:$0xff]
      %v427 = vld [vmem:[%s1 + $0x200] sm:$0xff]
      %v428 = vld [vmem:[%s1 + $0x208] sm:$0xff]
      %v429 = vld [vmem:[%s1 + $0x210] sm:$0xff]
      %v430 = vld [vmem:[%s1 + $0x218] sm:$0xff]
      %v431 = vld [vmem:[%s1 + $0x220] sm:$0xff]
      %v432 = vld [vmem:[%s1 + $0x228] sm:$0xff]
      %v433 = vld [vmem:[%s1 + $0x230] sm:$0xff]
      %v434 = vld [vmem:[%s1 + $0x238] sm:$0xff]
      %v435 = vld [vmem:[%s1 + $0x240] sm:$0xff]
      %v436 = vld [vmem:[%s1 + $0x248] sm:$0xff]
      %v437 = vld [vmem:[%s1 + $0x250] sm:$0xff]
      %v438 = vld [vmem:[%s1 + $0x258] sm:$0xff]
      %v439 = vld [vmem:[%s1 + $0x260] sm:$0xff]
      %v440 = vld [vmem:[%s1 + $0x268] sm:$0xff]
      %v441 = vld [vmem:[%s1 + $0x270] sm:$0xff]
      %v442 = vld [vmem:[%s1 + $0x278] sm:$0xff]
      %v443 = vld [vmem:[%s1 + $0x280] sm:$0xff]
      %v444 = vld [vmem:[%s1 + $0x288] sm:$0xff]
      %v445 = vld [vmem:[%s1 + $0x290] sm:$0xff]
      %v446 = vld [vmem:[%s1 + $0x298] sm:$0xff]
      %v447 = vld [vmem:[%s1 + $0x2a0] sm:$0xff]
      %v448 = vld [vmem:[%s1 + $0x2a8] sm:$0xff]
      %v449 = vld [vmem:[%s1 + $0x2b0] sm:$0xff]
      %v450 = vld [vmem:[%s1 + $0x2b8] sm:$0xff]
      %v451 = vld [vmem:[%s1 + $0x2c0] sm:$0xff]
      %v452 = vld [vmem:[%s1 + $0x2c8] sm:$0xff]
      %v453 = vld [vmem:[%s1 + $0x2d0] sm:$0xff]
      %v454 = vld [vmem:[%s1 + $0x2d8] sm:$0xff]
      %v455 = vld [vmem:[%s1 + $0x2e0] sm:$0xff]
      %v456 = vld [vmem:[%s1 + $0x2e8] sm:$0xff]
      %v457 = vld [vmem:[%s1 + $0x2f0] sm:$0xff]
      %v458 = vld [vmem:[%s1 + $0x2f8] sm:$0xff]
      %v459 = vld [vmem:[%s1 + $0x300] sm:$0xff]
      %v460 = vld [vmem:[%s1 + $0x308] sm:$0xff]
      %v461 = vld [vmem:[%s1 + $0x310] sm:$0xff]
      %v462 = vld [vmem:[%s1 + $0x318] sm:$0xff]
      %v463 = vld [vmem:[%s1 + $0x320] sm:$0xff]
      %v464 = vld [vmem:[%s1 + $0x328] sm:$0xff]
      %v465 = vld [vmem:[%s1 + $0x330] sm:$0xff]
      %v466 = vld [vmem:[%s1 + $0x338] sm:$0xff]
      %v467 = vld [vmem:[%s1 + $0x340] sm:$0xff]
      %v468 = vld [vmem:[%s1 + $0x348] sm:$0xff]
      %v469 = vld [vmem:[%s1 + $0x350] sm:$0xff]
      %v470 = vld [vmem:[%s1 + $0x358] sm:$0xff]
      %v471 = vld [vmem:[%s1 + $0x360] sm:$0xff]
      %v472 = vld [vmem:[%s1 + $0x368] sm:$0xff]
      %v473 = vld [vmem:[%s1 + $0x370] sm:$0xff]
      %v474 = vld [vmem:[%s1 + $0x378] sm:$0xff]
      %v475 = vld [vmem:[%s1 + $0x380] sm:$0xff]
      %v476 = vld [vmem:[%s1 + $0x388] sm:$0xff]
      %v477 = vld [vmem:[%s1 + $0x390] sm:$0xff]
      %v478 = vld [vmem:[%s1 + $0x398] sm:$0xff]
      %v479 = vld [vmem:[%s1 + $0x3a0] sm:$0xff]
      %v480 = vld [vmem:[%s1 + $0x3a8] sm:$0xff]
      %v481 = vld [vmem:[%s1 + $0x3b0] sm:$0xff]
      %v482 = vld [vmem:[%s1 + $0x3b8] sm:$0xff]
      %v483 = vld [vmem:[%s1 + $0x3c0] sm:$0xff]
      %v484 = vld [vmem:[%s1 + $0x3c8] sm:$0xff]
      %v485 = vld [vmem:[%s1 + $0x3d0] sm:$0xff]
      %v486 = vld [vmem:[%s1 + $0x3d8] sm:$0xff]
      %v487 = vld [vmem:[%s1 + $0x3e0] sm:$0xff]
      %v488 = vld [vmem:[%s1 + $0x3e8] sm:$0xff]
      %v489 = vld [vmem:[%s1 + $0x3f0] sm:$0xff]
      %v490 = vld [vmem:[%s1 + $0x3f8] sm:$0xff]
      %v491 = vld [vmem:[%s1 + $0x400] sm:$0xff]
      %v492 = vld [vmem:[%s1 + $0x408] sm:$0xff]
      %v493 = vld [vmem:[%s1 + $0x410] sm:$0xff]
      %v494 = vld [vmem:[%s1 + $0x418] sm:$0xff]
      %v495 = vld [vmem:[%s1 + $0x420] sm:$0xff]
      %v496 = vld [vmem:[%s1 + $0x428] sm:$0xff]
      %v497 = vld [vmem:[%s1 + $0x430] sm:$0xff]
      %v498 = vld [vmem:[%s1 + $0x438] sm:$0xff]
      %v499 = vld [vmem:[%s1 + $0x440] sm:$0xff]
      %v500 = vld [vmem:[%s1 + $0x448] sm:$0xff]
      %v501 = vld [vmem:[%s1 + $0x450] sm:$0xff]
      %v502 = vld [vmem:[%s1 + $0x458] sm:$0xff]
      %v503 = vld [vmem:[%s1 + $0x460] sm:$0xff]
      %v504 = vld [vmem:[%s1 + $0x468] sm:$0xff]
      %v505 = vld [vmem:[%s1 + $0x470] sm:$0xff]
      %v506 = vld [vmem:[%s1 + $0x478] sm:$0xff]
      %v507 = vld [vmem:[%s1 + $0x480] sm:$0xff]
      %v508 = vld [vmem:[%s1 + $0x488] sm:$0xff]
      %v509 = vld [vmem:[%s1 + $0x490] sm:$0xff]
      %v510 = vld [vmem:[%s1 + $0x498] sm:$0xff]
      %v511 = vld [vmem:[%s1 + $0x4a0] sm:$0xff]
      %v512 = vld [vmem:[%s1 + $0x4a8] sm:$0xff]
      %v513 = vld [vmem:[%s1 + $0x4b0] sm:$0xff]
      %v514 = vld [vmem:[%s1 + $0x4b8] sm:$0xff]
      %v515 = vld [vmem:[%s1 + $0x4c0] sm:$0xff]
      %v516 = vld [vmem:[%s1 + $0x4c8] sm:$0xff]
      %v517 = vld [vmem:[%s1 + $0x4d0] sm:$0xff]
      %v518 = vld [vmem:[%s1 + $0x4d8] sm:$0xff]
      %v519 = vld [vmem:[%s1 + $0x4e0] sm:$0xff]
      %v520 = vld [vmem:[%s1 + $0x4e8] sm:$0xff]
      %v521 = vld [vmem:[%s1 + $0x4f0] sm:$0xff]
      %v522 = vld [vmem:[%s1 + $0x4f8] sm:$0xff]
      %v523 = vld [vmem:[%s1 + $0x500] sm:$0xff]
      %v524 = vld [vmem:[%s1 + $0x508] sm:$0xff]
      %v525 = vld [vmem:[%s1 + $0x510] sm:$0xff]
      %v526 = vld [vmem:[%s1 + $0x518] sm:$0xff]
      %v527 = vld [vmem:[%s1 + $0x520] sm:$0xff]
      %v528 = vld [vmem:[%s1 + $0x528] sm:$0xff]
      %v529 = vld [vmem:[%s1 + $0x530] sm:$0xff]
      %v530 = vld [vmem:[%s1 + $0x538] sm:$0xff]
      %v531 = vld [vmem:[%s1 + $0x540] sm:$0xff]
      %v532 = vld [vmem:[%s1 + $0x548] sm:$0xff]
      %v533 = vld [vmem:[%s1 + $0x550] sm:$0xff]
      %v534 = vld [vmem:[%s1 + $0x558] sm:$0xff]
      %v535 = vld [vmem:[%s1 + $0x560] sm:$0xff]
      %v536 = vld [vmem:[%s1 + $0x568] sm:$0xff]
      %v537 = vld [vmem:[%s1 + $0x570] sm:$0xff]
      %v538 = vld [vmem:[%s1 + $0x578] sm:$0xff]
      %v539 = vld [vmem:[%s1 + $0x580] sm:$0xff]
      %v540 = vld [vmem:[%s1 + $0x588] sm:$0xff]
      %v541 = vld [vmem:[%s1 + $0x590] sm:$0xff]
      %v542 = vld [vmem:[%s1 + $0x598] sm:$0xff]
      %v543 = vld [vmem:[%s1 + $0x5a0] sm:$0xff]
      %v544 = vld [vmem:[%s1 + $0x5a8] sm:$0xff]
      %v545 = vld [vmem:[%s1 + $0x5b0] sm:$0xff]
      %v546 = vld [vmem:[%s1 + $0x5b8] sm:$0xff]
      %v547 = vld [vmem:[%s1 + $0x5c0] sm:$0xff]
      %v548 = vld [vmem:[%s1 + $0x5c8] sm:$0xff]
      %v549 = vld [vmem:[%s1 + $0x5d0] sm:$0xff]
      %v550 = vld [vmem:[%s1 + $0x5d8] sm:$0xff]
      %v551 = vld [vmem:[%s1 + $0x5e0] sm:$0xff]
      %v552 = vld [vmem:[%s1 + $0x5e8] sm:$0xff]
      %v553 = vld [vmem:[%s1 + $0x5f0] sm:$0xff]
      %v554 = vld [vmem:[%s1 + $0x5f8] sm:$0xff]
      %v555 = vld [vmem:[%s1 + $0x600] sm:$0xff]
      %v556 = vld [vmem:[%s1 + $0x608] sm:$0xff]
      %v557 = vld [vmem:[%s1 + $0x610] sm:$0xff]
      %v558 = vld [vmem:[%s1 + $0x618] sm:$0xff]
      %v559 = vld [vmem:[%s2] sm:$0xf]
      %v561 = vlaneseq
      %v562 = vshrl.u32 %v561, 7
      %v563 = vsub.s32 0, %v562
      %v564 = vrot.slane %v559, %v563
      %v565 = vlaneseq
      %v566 = vshrl.u32 %v565, 7
      %v567 = vsub.s32 1, %v566
      %v568 = vrot.slane %v559, %v567
      %v569 = vlaneseq
      %v570 = vshrl.u32 %v569, 7
      %v571 = vsub.s32 2, %v570
      %v572 = vrot.slane %v559, %v571
      %v573 = vlaneseq
      %v574 = vshrl.u32 %v573, 7
      %v575 = vsub.s32 3, %v574
      %v576 = vrot.slane %v559, %v575
      %v777 = vunpack.c.l.b16 %v363
      %v778 = vunpack.c.h.b16 %v363
      %v779 = vunpack.c.l.b16 %v364
      %v780 = vunpack.c.h.b16 %v364
      %v781 = vunpack.c.l.b16 %v365
      %v782 = vunpack.c.h.b16 %v365
      %v783 = vunpack.c.l.b16 %v366
      %v784 = vunpack.c.h.b16 %v366
      %v785 = vunpack.c.l.b16 %v367
      %v786 = vunpack.c.h.b16 %v367
      %v787 = vunpack.c.l.b16 %v368
      %v788 = vunpack.c.h.b16 %v368
      %v789 = vunpack.c.l.b16 %v369
      %v790 = vunpack.c.h.b16 %v369
      %v791 = vunpack.c.l.b16 %v370
      %v792 = vunpack.c.h.b16 %v370
      %v793 = vunpack.c.l.b16 %v371
      %v794 = vunpack.c.h.b16 %v371
      %v795 = vunpack.c.l.b16 %v372
      %v796 = vunpack.c.h.b16 %v372
      %v797 = vunpack.c.l.b16 %v373
      %v798 = vunpack.c.h.b16 %v373
      %v799 = vunpack.c.l.b16 %v374
      %v800 = vunpack.c.h.b16 %v374
      %v801 = vunpack.c.l.b16 %v375
      %v802 = vunpack.c.h.b16 %v375
      %v803 = vunpack.c.l.b16 %v376
      %v804 = vunpack.c.h.b16 %v376
      %v805 = vunpack.c.l.b16 %v377
      %v806 = vunpack.c.h.b16 %v377
      %v807 = vunpack.c.l.b16 %v378
      %v808 = vunpack.c.h.b16 %v378
      %v809 = vunpack.c.l.b16 %v379
      %v810 = vunpack.c.h.b16 %v379
      %v811 = vunpack.c.l.b16 %v380
      %v812 = vunpack.c.h.b16 %v380
      %v813 = vunpack.c.l.b16 %v381
      %v814 = vunpack.c.h.b16 %v381
      %v815 = vunpack.c.l.b16 %v382
      %v816 = vunpack.c.h.b16 %v382
      %v817 = vunpack.c.l.b16 %v383
      %v818 = vunpack.c.h.b16 %v383
      %v819 = vunpack.c.l.b16 %v384
      %v820 = vunpack.c.h.b16 %v384
      %v821 = vunpack.c.l.b16 %v385
      %v822 = vunpack.c.h.b16 %v385
      %v823 = vunpack.c.l.b16 %v386
      %v824 = vunpack.c.h.b16 %v386
      %v825 = vunpack.c.l.b16 %v387
      %v826 = vunpack.c.h.b16 %v387
      %v827 = vunpack.c.l.b16 %v388
      %v828 = vunpack.c.h.b16 %v388
      %v829 = vunpack.c.l.b16 %v389
      %v830 = vunpack.c.h.b16 %v389
      %v831 = vunpack.c.l.b16 %v390
      %v832 = vunpack.c.h.b16 %v390
      %v833 = vunpack.c.l.b16 %v391
      %v834 = vunpack.c.h.b16 %v391
      %v835 = vunpack.c.l.b16 %v392
      %v836 = vunpack.c.h.b16 %v392
      %v837 = vunpack.c.l.b16 %v393
      %v838 = vunpack.c.h.b16 %v393
      %v839 = vunpack.c.l.b16 %v394
      %v840 = vunpack.c.h.b16 %v394
      %v841 = vunpack.c.l.b16 %v395
      %v842 = vunpack.c.h.b16 %v395
      %v843 = vunpack.c.l.b16 %v396
      %v844 = vunpack.c.h.b16 %v396
      %v845 = vunpack.c.l.b16 %v397
      %v846 = vunpack.c.h.b16 %v397
      %v847 = vunpack.c.l.b16 %v398
      %v848 = vunpack.c.h.b16 %v398
      %v849 = vunpack.c.l.b16 %v399
      %v850 = vunpack.c.h.b16 %v399
      %v851 = vunpack.c.l.b16 %v400
      %v852 = vunpack.c.h.b16 %v400
      %v853 = vunpack.c.l.b16 %v401
      %v854 = vunpack.c.h.b16 %v401
      %v855 = vunpack.c.l.b16 %v402
      %v856 = vunpack.c.h.b16 %v402
      %v857 = vunpack.c.l.b16 %v403
      %v858 = vunpack.c.h.b16 %v403
      %v859 = vunpack.c.l.b16 %v404
      %v860 = vunpack.c.h.b16 %v404
      %v861 = vunpack.c.l.b16 %v405
      %v862 = vunpack.c.h.b16 %v405
      %v863 = vunpack.c.l.b16 %v406
      %v864 = vunpack.c.h.b16 %v406
      %v865 = vunpack.c.l.b16 %v407
      %v866 = vunpack.c.h.b16 %v407
      %v867 = vunpack.c.l.b16 %v408
      %v868 = vunpack.c.h.b16 %v408
      %v869 = vunpack.c.l.b16 %v409
      %v870 = vunpack.c.h.b16 %v409
      %v871 = vunpack.c.l.b16 %v410
      %v872 = vunpack.c.h.b16 %v410
      %v873 = vunpack.c.l.b16 %v411
      %v874 = vunpack.c.h.b16 %v411
      %v875 = vunpack.c.l.b16 %v412
      %v876 = vunpack.c.h.b16 %v412
      %v877 = vunpack.c.l.b16 %v413
      %v878 = vunpack.c.h.b16 %v413
      %v879 = vunpack.c.l.b16 %v414
      %v880 = vunpack.c.h.b16 %v414
      %v881 = vunpack.c.l.b16 %v415
      %v882 = vunpack.c.h.b16 %v415
      %v883 = vunpack.c.l.b16 %v416
      %v884 = vunpack.c.h.b16 %v416
      %v885 = vunpack.c.l.b16 %v417
      %v886 = vunpack.c.h.b16 %v417
      %v887 = vunpack.c.l.b16 %v418
      %v888 = vunpack.c.h.b16 %v418
      %v889 = vunpack.c.l.b16 %v419
      %v890 = vunpack.c.h.b16 %v419
      %v891 = vunpack.c.l.b16 %v420
      %v892 = vunpack.c.h.b16 %v420
      %v893 = vunpack.c.l.b16 %v421
      %v894 = vunpack.c.h.b16 %v421
      %v895 = vunpack.c.l.b16 %v422
      %v896 = vunpack.c.h.b16 %v422
      %v897 = vunpack.c.l.b16 %v423
      %v898 = vunpack.c.h.b16 %v423
      %v899 = vunpack.c.l.b16 %v424
      %v900 = vunpack.c.h.b16 %v424
      %v901 = vunpack.c.l.b16 %v425
      %v902 = vunpack.c.h.b16 %v425
      %v903 = vunpack.c.l.b16 %v426
      %v904 = vunpack.c.h.b16 %v426
      %v905 = vunpack.c.l.b16 %v427
      %v906 = vunpack.c.h.b16 %v427
      %v907 = vunpack.c.l.b16 %v428
      %v908 = vunpack.c.h.b16 %v428
      %v909 = vunpack.c.l.b16 %v429
      %v910 = vunpack.c.h.b16 %v429
      %v911 = vunpack.c.l.b16 %v430
      %v912 = vunpack.c.h.b16 %v430
      %v913 = vunpack.c.l.b16 %v431
      %v914 = vunpack.c.h.b16 %v431
      %v915 = vunpack.c.l.b16 %v432
      %v916 = vunpack.c.h.b16 %v432
      %v917 = vunpack.c.l.b16 %v433
      %v918 = vunpack.c.h.b16 %v433
      %v919 = vunpack.c.l.b16 %v434
      %v920 = vunpack.c.h.b16 %v434
      %v921 = vunpack.c.l.b16 %v435
      %v922 = vunpack.c.h.b16 %v435
      %v923 = vunpack.c.l.b16 %v436
      %v924 = vunpack.c.h.b16 %v436
      %v925 = vunpack.c.l.b16 %v437
      %v926 = vunpack.c.h.b16 %v437
      %v927 = vunpack.c.l.b16 %v438
      %v928 = vunpack.c.h.b16 %v438
      %v929 = vunpack.c.l.b16 %v439
      %v930 = vunpack.c.h.b16 %v439
      %v931 = vunpack.c.l.b16 %v440
      %v932 = vunpack.c.h.b16 %v440
      %v933 = vunpack.c.l.b16 %v441
      %v934 = vunpack.c.h.b16 %v441
      %v935 = vunpack.c.l.b16 %v442
      %v936 = vunpack.c.h.b16 %v442
      %v937 = vunpack.c.l.b16 %v443
      %v938 = vunpack.c.h.b16 %v443
      %v939 = vunpack.c.l.b16 %v444
      %v940 = vunpack.c.h.b16 %v444
      %v941 = vunpack.c.l.b16 %v445
      %v942 = vunpack.c.h.b16 %v445
      %v943 = vunpack.c.l.b16 %v446
      %v944 = vunpack.c.h.b16 %v446
      %v945 = vunpack.c.l.b16 %v447
      %v946 = vunpack.c.h.b16 %v447
      %v947 = vunpack.c.l.b16 %v448
      %v948 = vunpack.c.h.b16 %v448
      %v949 = vunpack.c.l.b16 %v449
      %v950 = vunpack.c.h.b16 %v449
      %v951 = vunpack.c.l.b16 %v450
      %v952 = vunpack.c.h.b16 %v450
      %v953 = vunpack.c.l.b16 %v451
      %v954 = vunpack.c.h.b16 %v451
      %v955 = vunpack.c.l.b16 %v452
      %v956 = vunpack.c.h.b16 %v452
      %v957 = vunpack.c.l.b16 %v453
      %v958 = vunpack.c.h.b16 %v453
      %v959 = vunpack.c.l.b16 %v454
      %v960 = vunpack.c.h.b16 %v454
      %v961 = vunpack.c.l.b16 %v455
      %v962 = vunpack.c.h.b16 %v455
      %v963 = vunpack.c.l.b16 %v456
      %v964 = vunpack.c.h.b16 %v456
      %v965 = vunpack.c.l.b16 %v457
      %v966 = vunpack.c.h.b16 %v457
      %v967 = vunpack.c.l.b16 %v458
      %v968 = vunpack.c.h.b16 %v458
      %v969 = vunpack.c.l.b16 %v459
      %v970 = vunpack.c.h.b16 %v459
      %v971 = vunpack.c.l.b16 %v460
      %v972 = vunpack.c.h.b16 %v460
      %v973 = vunpack.c.l.b16 %v461
      %v974 = vunpack.c.h.b16 %v461
      %v975 = vunpack.c.l.b16 %v462
      %v976 = vunpack.c.h.b16 %v462
      %v977 = vunpack.c.l.b16 %v463
      %v978 = vunpack.c.h.b16 %v463
      %v979 = vunpack.c.l.b16 %v464
      %v980 = vunpack.c.h.b16 %v464
      %v981 = vunpack.c.l.b16 %v465
      %v982 = vunpack.c.h.b16 %v465
      %v983 = vunpack.c.l.b16 %v466
      %v984 = vunpack.c.h.b16 %v466
      %v985 = vunpack.c.l.b16 %v467
      %v986 = vunpack.c.h.b16 %v467
      %v987 = vunpack.c.l.b16 %v468
      %v988 = vunpack.c.h.b16 %v468
      %v989 = vunpack.c.l.b16 %v469
      %v990 = vunpack.c.h.b16 %v469
      %v991 = vunpack.c.l.b16 %v470
      %v992 = vunpack.c.h.b16 %v470
      %v993 = vunpack.c.l.b16 %v471
      %v994 = vunpack.c.h.b16 %v471
      %v995 = vunpack.c.l.b16 %v472
      %v996 = vunpack.c.h.b16 %v472
      %v997 = vunpack.c.l.b16 %v473
      %v998 = vunpack.c.h.b16 %v473
      %v999 = vunpack.c.l.b16 %v474
      %v1000 = vunpack.c.h.b16 %v474
      %v1001 = vunpack.c.l.b16 %v475
      %v1002 = vunpack.c.h.b16 %v475
      %v1003 = vunpack.c.l.b16 %v476
      %v1004 = vunpack.c.h.b16 %v476
      %v1005 = vunpack.c.l.b16 %v477
      %v1006 = vunpack.c.h.b16 %v477
      %v1007 = vunpack.c.l.b16 %v478
      %v1008 = vunpack.c.h.b16 %v478
      %v1009 = vunpack.c.l.b16 %v479
      %v1010 = vunpack.c.h.b16 %v479
      %v1011 = vunpack.c.l.b16 %v480
      %v1012 = vunpack.c.h.b16 %v480
      %v1013 = vunpack.c.l.b16 %v481
      %v1014 = vunpack.c.h.b16 %v481
      %v1015 = vunpack.c.l.b16 %v482
      %v1016 = vunpack.c.h.b16 %v482
      %v1017 = vunpack.c.l.b16 %v483
      %v1018 = vunpack.c.h.b16 %v483
      %v1019 = vunpack.c.l.b16 %v484
      %v1020 = vunpack.c.h.b16 %v484
      %v1021 = vunpack.c.l.b16 %v485
      %v1022 = vunpack.c.h.b16 %v485
      %v1023 = vunpack.c.l.b16 %v486
      %v1024 = vunpack.c.h.b16 %v486
      %v1025 = vunpack.c.l.b16 %v487
      %v1026 = vunpack.c.h.b16 %v487
      %v1027 = vunpack.c.l.b16 %v488
      %v1028 = vunpack.c.h.b16 %v488
      %v1029 = vunpack.c.l.b16 %v489
      %v1030 = vunpack.c.h.b16 %v489
      %v1031 = vunpack.c.l.b16 %v490
      %v1032 = vunpack.c.h.b16 %v490
      %v1033 = vunpack.c.l.b16 %v491
      %v1034 = vunpack.c.h.b16 %v491
      %v1035 = vunpack.c.l.b16 %v492
      %v1036 = vunpack.c.h.b16 %v492
      %v1037 = vunpack.c.l.b16 %v493
      %v1038 = vunpack.c.h.b16 %v493
      %v1039 = vunpack.c.l.b16 %v494
      %v1040 = vunpack.c.h.b16 %v494
      %v1041 = vunpack.c.l.b16 %v495
      %v1042 = vunpack.c.h.b16 %v495
      %v1043 = vunpack.c.l.b16 %v496
      %v1044 = vunpack.c.h.b16 %v496
      %v1045 = vunpack.c.l.b16 %v497
      %v1046 = vunpack.c.h.b16 %v497
      %v1047 = vunpack.c.l.b16 %v498
      %v1048 = vunpack.c.h.b16 %v498
      %v1049 = vunpack.c.l.b16 %v499
      %v1050 = vunpack.c.h.b16 %v499
      %v1051 = vunpack.c.l.b16 %v500
      %v1052 = vunpack.c.h.b16 %v500
      %v1053 = vunpack.c.l.b16 %v501
      %v1054 = vunpack.c.h.b16 %v501
      %v1055 = vunpack.c.l.b16 %v502
      %v1056 = vunpack.c.h.b16 %v502
      %v1057 = vunpack.c.l.b16 %v503
      %v1058 = vunpack.c.h.b16 %v503
      %v1059 = vunpack.c.l.b16 %v504
      %v1060 = vunpack.c.h.b16 %v504
      %v1061 = vunpack.c.l.b16 %v505
      %v1062 = vunpack.c.h.b16 %v505
      %v1063 = vunpack.c.l.b16 %v506
      %v1064 = vunpack.c.h.b16 %v506
      %v1065 = vunpack.c.l.b16 %v507
      %v1066 = vunpack.c.h.b16 %v507
      %v1067 = vunpack.c.l.b16 %v508
      %v1068 = vunpack.c.h.b16 %v508
      %v1069 = vunpack.c.l.b16 %v509
      %v1070 = vunpack.c.h.b16 %v509
      %v1071 = vunpack.c.l.b16 %v510
      %v1072 = vunpack.c.h.b16 %v510
      %v1073 = vunpack.c.l.b16 %v511
      %v1074 = vunpack.c.h.b16 %v511
      %v1075 = vunpack.c.l.b16 %v512
      %v1076 = vunpack.c.h.b16 %v512
      %v1077 = vunpack.c.l.b16 %v513
      %v1078 = vunpack.c.h.b16 %v513
      %v1079 = vunpack.c.l.b16 %v514
      %v1080 = vunpack.c.h.b16 %v514
      %v1081 = vunpack.c.l.b16 %v515
      %v1082 = vunpack.c.h.b16 %v515
      %v1083 = vunpack.c.l.b16 %v516
      %v1084 = vunpack.c.h.b16 %v516
      %v1085 = vunpack.c.l.b16 %v517
      %v1086 = vunpack.c.h.b16 %v517
      %v1087 = vunpack.c.l.b16 %v518
      %v1088 = vunpack.c.h.b16 %v518
      %v1089 = vunpack.c.l.b16 %v519
      %v1090 = vunpack.c.h.b16 %v519
      %v1091 = vunpack.c.l.b16 %v520
      %v1092 = vunpack.c.h.b16 %v520
      %v1093 = vunpack.c.l.b16 %v521
      %v1094 = vunpack.c.h.b16 %v521
      %v1095 = vunpack.c.l.b16 %v522
      %v1096 = vunpack.c.h.b16 %v522
      %v1097 = vunpack.c.l.b16 %v523
      %v1098 = vunpack.c.h.b16 %v523
      %v1099 = vunpack.c.l.b16 %v524
      %v1100 = vunpack.c.h.b16 %v524
      %v1101 = vunpack.c.l.b16 %v525
      %v1102 = vunpack.c.h.b16 %v525
      %v1103 = vunpack.c.l.b16 %v526
      %v1104 = vunpack.c.h.b16 %v526
      %v1105 = vunpack.c.l.b16 %v527
      %v1106 = vunpack.c.h.b16 %v527
      %v1107 = vunpack.c.l.b16 %v528
      %v1108 = vunpack.c.h.b16 %v528
      %v1109 = vunpack.c.l.b16 %v529
      %v1110 = vunpack.c.h.b16 %v529
      %v1111 = vunpack.c.l.b16 %v530
      %v1112 = vunpack.c.h.b16 %v530
      %v1113 = vunpack.c.l.b16 %v531
      %v1114 = vunpack.c.h.b16 %v531
      %v1115 = vunpack.c.l.b16 %v532
      %v1116 = vunpack.c.h.b16 %v532
      %v1117 = vunpack.c.l.b16 %v533
      %v1118 = vunpack.c.h.b16 %v533
      %v1119 = vunpack.c.l.b16 %v534
      %v1120 = vunpack.c.h.b16 %v534
      %v1121 = vunpack.c.l.b16 %v535
      %v1122 = vunpack.c.h.b16 %v535
      %v1123 = vunpack.c.l.b16 %v536
      %v1124 = vunpack.c.h.b16 %v536
      %v1125 = vunpack.c.l.b16 %v537
      %v1126 = vunpack.c.h.b16 %v537
      %v1127 = vunpack.c.l.b16 %v538
      %v1128 = vunpack.c.h.b16 %v538
      %v1129 = vunpack.c.l.b16 %v539
      %v1130 = vunpack.c.h.b16 %v539
      %v1131 = vunpack.c.l.b16 %v540
      %v1132 = vunpack.c.h.b16 %v540
      %v1133 = vunpack.c.l.b16 %v541
      %v1134 = vunpack.c.h.b16 %v541
      %v1135 = vunpack.c.l.b16 %v542
      %v1136 = vunpack.c.h.b16 %v542
      %v1137 = vunpack.c.l.b16 %v543
      %v1138 = vunpack.c.h.b16 %v543
      %v1139 = vunpack.c.l.b16 %v544
      %v1140 = vunpack.c.h.b16 %v544
      %v1141 = vunpack.c.l.b16 %v545
      %v1142 = vunpack.c.h.b16 %v545
      %v1143 = vunpack.c.l.b16 %v546
      %v1144 = vunpack.c.h.b16 %v546
      %v1145 = vunpack.c.l.b16 %v547
      %v1146 = vunpack.c.h.b16 %v547
      %v1147 = vunpack.c.l.b16 %v548
      %v1148 = vunpack.c.h.b16 %v548
      %v1149 = vunpack.c.l.b16 %v549
      %v1150 = vunpack.c.h.b16 %v549
      %v1151 = vunpack.c.l.b16 %v550
      %v1152 = vunpack.c.h.b16 %v550
      %v1153 = vunpack.c.l.b16 %v551
      %v1154 = vunpack.c.h.b16 %v551
      %v1155 = vunpack.c.l.b16 %v552
      %v1156 = vunpack.c.h.b16 %v552
      %v1157 = vunpack.c.l.b16 %v553
      %v1158 = vunpack.c.h.b16 %v553
      %v1159 = vunpack.c.l.b16 %v554
      %v1160 = vunpack.c.h.b16 %v554
      %v1161 = vunpack.c.l.b16 %v555
      %v1162 = vunpack.c.h.b16 %v555
      %v1163 = vunpack.c.l.b16 %v556
      %v1164 = vunpack.c.h.b16 %v556
      %v1165 = vunpack.c.l.b16 %v557
      %v1166 = vunpack.c.h.b16 %v557
      %v1167 = vunpack.c.l.b16 %v558
      %v1168 = vunpack.c.h.b16 %v558
      %v1169 = vpack.c.b16 %v781, %v777
      %v1170 = vpack.c.b16 %v782, %v778
      %v1171 = vpack.c.b16 %v783, %v779
      %v1172 = vpack.c.b16 %v784, %v780
      %v1173 = vpack.c.b16 %v789, %v785
      %v1174 = vpack.c.b16 %v790, %v786
      %v1175 = vpack.c.b16 %v791, %v787
      %v1176 = vpack.c.b16 %v792, %v788
      %v1177 = vpack.c.b16 %v797, %v793
      %v1178 = vpack.c.b16 %v798, %v794
      %v1179 = vpack.c.b16 %v799, %v795
      %v1180 = vpack.c.b16 %v800, %v796
      %v1181 = vpack.c.b16 %v805, %v801
      %v1182 = vpack.c.b16 %v806, %v802
      %v1183 = vpack.c.b16 %v807, %v803
      %v1184 = vpack.c.b16 %v808, %v804
      %v1185 = vpack.c.b16 %v813, %v809
      %v1186 = vpack.c.b16 %v814, %v810
      %v1187 = vpack.c.b16 %v815, %v811
      %v1188 = vpack.c.b16 %v816, %v812
      %v1189 = vpack.c.b16 %v821, %v817
      %v1190 = vpack.c.b16 %v822, %v818
      %v1191 = vpack.c.b16 %v823, %v819
      %v1192 = vpack.c.b16 %v824, %v820
      %v1193 = vpack.c.b16 %v829, %v825
      %v1194 = vpack.c.b16 %v830, %v826
      %v1195 = vpack.c.b16 %v831, %v827
      %v1196 = vpack.c.b16 %v832, %v828
      %v1197 = vpack.c.b16 %v837, %v833
      %v1198 = vpack.c.b16 %v838, %v834
      %v1199 = vpack.c.b16 %v839, %v835
      %v1200 = vpack.c.b16 %v840, %v836
      %v1201 = vpack.c.b16 %v845, %v841
      %v1202 = vpack.c.b16 %v846, %v842
      %v1203 = vpack.c.b16 %v847, %v843
      %v1204 = vpack.c.b16 %v848, %v844
      %v1205 = vpack.c.b16 %v853, %v849
      %v1206 = vpack.c.b16 %v854, %v850
      %v1207 = vpack.c.b16 %v855, %v851
      %v1208 = vpack.c.b16 %v856, %v852
      %v1209 = vpack.c.b16 %v861, %v857
      %v1210 = vpack.c.b16 %v862, %v858
      %v1211 = vpack.c.b16 %v863, %v859
      %v1212 = vpack.c.b16 %v864, %v860
      %v1213 = vpack.c.b16 %v869, %v865
      %v1214 = vpack.c.b16 %v870, %v866
      %v1215 = vpack.c.b16 %v871, %v867
      %v1216 = vpack.c.b16 %v872, %v868
      %v1217 = vpack.c.b16 %v877, %v873
      %v1218 = vpack.c.b16 %v878, %v874
      %v1219 = vpack.c.b16 %v879, %v875
      %v1220 = vpack.c.b16 %v880, %v876
      %v1221 = vpack.c.b16 %v885, %v881
      %v1222 = vpack.c.b16 %v886, %v882
      %v1223 = vpack.c.b16 %v887, %v883
      %v1224 = vpack.c.b16 %v888, %v884
      %v1225 = vpack.c.b16 %v893, %v889
      %v1226 = vpack.c.b16 %v894, %v890
      %v1227 = vpack.c.b16 %v895, %v891
      %v1228 = vpack.c.b16 %v896, %v892
      %v1229 = vpack.c.b16 %v901, %v897
      %v1230 = vpack.c.b16 %v902, %v898
      %v1231 = vpack.c.b16 %v903, %v899
      %v1232 = vpack.c.b16 %v904, %v900
      %v1233 = vpack.c.b16 %v909, %v905
      %v1234 = vpack.c.b16 %v910, %v906
      %v1235 = vpack.c.b16 %v911, %v907
      %v1236 = vpack.c.b16 %v912, %v908
      %v1237 = vpack.c.b16 %v917, %v913
      %v1238 = vpack.c.b16 %v918, %v914
      %v1239 = vpack.c.b16 %v919, %v915
      %v1240 = vpack.c.b16 %v920, %v916
      %v1241 = vpack.c.b16 %v925, %v921
      %v1242 = vpack.c.b16 %v926, %v922
      %v1243 = vpack.c.b16 %v927, %v923
      %v1244 = vpack.c.b16 %v928, %v924
      %v1245 = vpack.c.b16 %v933, %v929
      %v1246 = vpack.c.b16 %v934, %v930
      %v1247 = vpack.c.b16 %v935, %v931
      %v1248 = vpack.c.b16 %v936, %v932
      %v1249 = vpack.c.b16 %v941, %v937
      %v1250 = vpack.c.b16 %v942, %v938
      %v1251 = vpack.c.b16 %v943, %v939
      %v1252 = vpack.c.b16 %v944, %v940
      %v1253 = vpack.c.b16 %v949, %v945
      %v1254 = vpack.c.b16 %v950, %v946
      %v1255 = vpack.c.b16 %v951, %v947
      %v1256 = vpack.c.b16 %v952, %v948
      %v1257 = vpack.c.b16 %v957, %v953
      %v1258 = vpack.c.b16 %v958, %v954
      %v1259 = vpack.c.b16 %v959, %v955
      %v1260 = vpack.c.b16 %v960, %v956
      %v1261 = vpack.c.b16 %v965, %v961
      %v1262 = vpack.c.b16 %v966, %v962
      %v1263 = vpack.c.b16 %v967, %v963
      %v1264 = vpack.c.b16 %v968, %v964
      %v1265 = vpack.c.b16 %v973, %v969
      %v1266 = vpack.c.b16 %v974, %v970
      %v1267 = vpack.c.b16 %v975, %v971
      %v1268 = vpack.c.b16 %v976, %v972
      %v1269 = vpack.c.b16 %v981, %v977
      %v1270 = vpack.c.b16 %v982, %v978
      %v1271 = vpack.c.b16 %v983, %v979
      %v1272 = vpack.c.b16 %v984, %v980
      %v1273 = vpack.c.b16 %v989, %v985
      %v1274 = vpack.c.b16 %v990, %v986
      %v1275 = vpack.c.b16 %v991, %v987
      %v1276 = vpack.c.b16 %v992, %v988
      %v1277 = vpack.c.b16 %v997, %v993
      %v1278 = vpack.c.b16 %v998, %v994
      %v1279 = vpack.c.b16 %v999, %v995
      %v1280 = vpack.c.b16 %v1000, %v996
      %v1281 = vpack.c.b16 %v1005, %v1001
      %v1282 = vpack.c.b16 %v1006, %v1002
      %v1283 = vpack.c.b16 %v1007, %v1003
      %v1284 = vpack.c.b16 %v1008, %v1004
      %v1285 = vpack.c.b16 %v1013, %v1009
      %v1286 = vpack.c.b16 %v1014, %v1010
      %v1287 = vpack.c.b16 %v1015, %v1011
      %v1288 = vpack.c.b16 %v1016, %v1012
      %v1289 = vpack.c.b16 %v1021, %v1017
      %v1290 = vpack.c.b16 %v1022, %v1018
      %v1291 = vpack.c.b16 %v1023, %v1019
      %v1292 = vpack.c.b16 %v1024, %v1020
      %v1293 = vpack.c.b16 %v1029, %v1025
      %v1294 = vpack.c.b16 %v1030, %v1026
      %v1295 = vpack.c.b16 %v1031, %v1027
      %v1296 = vpack.c.b16 %v1032, %v1028
      %v1297 = vpack.c.b16 %v1037, %v1033
      %v1298 = vpack.c.b16 %v1038, %v1034
      %v1299 = vpack.c.b16 %v1039, %v1035
      %v1300 = vpack.c.b16 %v1040, %v1036
      %v1301 = vpack.c.b16 %v1045, %v1041
      %v1302 = vpack.c.b16 %v1046, %v1042
      %v1303 = vpack.c.b16 %v1047, %v1043
      %v1304 = vpack.c.b16 %v1048, %v1044
      %v1305 = vpack.c.b16 %v1053, %v1049
      %v1306 = vpack.c.b16 %v1054, %v1050
      %v1307 = vpack.c.b16 %v1055, %v1051
      %v1308 = vpack.c.b16 %v1056, %v1052
      %v1309 = vpack.c.b16 %v1061, %v1057
      %v1310 = vpack.c.b16 %v1062, %v1058
      %v1311 = vpack.c.b16 %v1063, %v1059
      %v1312 = vpack.c.b16 %v1064, %v1060
      %v1313 = vpack.c.b16 %v1069, %v1065
      %v1314 = vpack.c.b16 %v1070, %v1066
      %v1315 = vpack.c.b16 %v1071, %v1067
      %v1316 = vpack.c.b16 %v1072, %v1068
      %v1317 = vpack.c.b16 %v1077, %v1073
      %v1318 = vpack.c.b16 %v1078, %v1074
      %v1319 = vpack.c.b16 %v1079, %v1075
      %v1320 = vpack.c.b16 %v1080, %v1076
      %v1321 = vpack.c.b16 %v1085, %v1081
      %v1322 = vpack.c.b16 %v1086, %v1082
      %v1323 = vpack.c.b16 %v1087, %v1083
      %v1324 = vpack.c.b16 %v1088, %v1084
      %v1325 = vpack.c.b16 %v1093, %v1089
      %v1326 = vpack.c.b16 %v1094, %v1090
      %v1327 = vpack.c.b16 %v1095, %v1091
      %v1328 = vpack.c.b16 %v1096, %v1092
      %v1329 = vpack.c.b16 %v1101, %v1097
      %v1330 = vpack.c.b16 %v1102, %v1098
      %v1331 = vpack.c.b16 %v1103, %v1099
      %v1332 = vpack.c.b16 %v1104, %v1100
      %v1333 = vpack.c.b16 %v1109, %v1105
      %v1334 = vpack.c.b16 %v1110, %v1106
      %v1335 = vpack.c.b16 %v1111, %v1107
      %v1336 = vpack.c.b16 %v1112, %v1108
      %v1337 = vpack.c.b16 %v1117, %v1113
      %v1338 = vpack.c.b16 %v1118, %v1114
      %v1339 = vpack.c.b16 %v1119, %v1115
      %v1340 = vpack.c.b16 %v1120, %v1116
      %v1341 = vpack.c.b16 %v1125, %v1121
      %v1342 = vpack.c.b16 %v1126, %v1122
      %v1343 = vpack.c.b16 %v1127, %v1123
      %v1344 = vpack.c.b16 %v1128, %v1124
      %v1345 = vpack.c.b16 %v1133, %v1129
      %v1346 = vpack.c.b16 %v1134, %v1130
      %v1347 = vpack.c.b16 %v1135, %v1131
      %v1348 = vpack.c.b16 %v1136, %v1132
      %v1349 = vpack.c.b16 %v1141, %v1137
      %v1350 = vpack.c.b16 %v1142, %v1138
      %v1351 = vpack.c.b16 %v1143, %v1139
      %v1352 = vpack.c.b16 %v1144, %v1140
      %v1353 = vpack.c.b16 %v1149, %v1145
      %v1354 = vpack.c.b16 %v1150, %v1146
      %v1355 = vpack.c.b16 %v1151, %v1147
      %v1356 = vpack.c.b16 %v1152, %v1148
      %v1357 = vpack.c.b16 %v1157, %v1153
      %v1358 = vpack.c.b16 %v1158, %v1154
      %v1359 = vpack.c.b16 %v1159, %v1155
      %v1360 = vpack.c.b16 %v1160, %v1156
      %v1361 = vpack.c.b16 %v1165, %v1161
      %v1362 = vpack.c.b16 %v1166, %v1162
      %v1363 = vpack.c.b16 %v1167, %v1163
      %v1364 = vpack.c.b16 %v1168, %v1164
      %vm1561 = vcmask 130048
      %v1563 = vsel %vm1561, %v362, 0
      %1565 = vmatprep.subr.bf16.mxu0 %v1170
      %1566 = vmatpush1.bf16.msra.mxu0 %v1169
      %1567 = vmatprep.subr.bf16.mxu0 %v1174
      %1568 = vmatpush1.bf16.msra.mxu0 %v1173
      %1569 = vmatprep.subr.bf16.mxu0 %v1178
      %1570 = vmatpush1.bf16.msra.mxu0 %v1177
      %1571 = vmatprep.subr.bf16.mxu0 %v1182
      %1572 = vmatpush1.bf16.msra.mxu0 %v1181
      %1573 = vmatprep.subr.bf16.mxu0 %v1186
      %1574 = vmatpush1.bf16.msra.mxu0 %v1185
      %1575 = vmatprep.subr.bf16.mxu0 %v1190
      %1576 = vmatpush1.bf16.msra.mxu0 %v1189
      %1577 = vmatprep.subr.bf16.mxu0 %v1194
      %1578 = vmatpush1.bf16.msra.mxu0 %v1193
      %1579 = vmatprep.subr.bf16.mxu0 %v1198
      %1580 = vmatpush1.bf16.msra.mxu0 %v1197
      %1581 = vmatprep.subr.bf16.mxu0 %v1202
      %1582 = vmatpush1.bf16.msra.mxu0 %v1201
      %1583 = vmatprep.subr.bf16.mxu0 %v1206
      %1584 = vmatpush1.bf16.msra.mxu0 %v1205
      %1585 = vmatprep.subr.bf16.mxu0 %v1210
      %1586 = vmatpush1.bf16.msra.mxu0 %v1209
      %1587 = vmatprep.subr.bf16.mxu0 %v1214
      %1588 = vmatpush1.bf16.msra.mxu0 %v1213
      %1589 = vmatprep.subr.bf16.mxu0 %v1218
      %1590 = vmatpush1.bf16.msra.mxu0 %v1217
      %1591 = vmatprep.subr.bf16.mxu0 %v1222
      %1592 = vmatpush1.bf16.msra.mxu0 %v1221
      %1593 = vmatprep.subr.bf16.mxu0 %v1226
      %1594 = vmatpush1.bf16.msra.mxu0 %v1225
      %1595 = vmatprep.subr.bf16.mxu0 %v1230
      %1596 = vmatpush1.bf16.msra.mxu0 %v1229
      %1597 = vmatprep.mubr.bf16.mxu0 %v357
      %1598 = vmatmul.mubr.bf16.gmra.mrb[0].mxu0 %v356
      %v1599 = vpop.f32.mrb[0].mxu0
      %v1600 = vadd.f32 %v564, %v1599
      %v1601 = vpop.f32.mrb[0].mxu0
      %v1602 = vadd.f32 %v568, %v1601
      %v1603 = vpop.f32.mrb[0].mxu0
      %v1604 = vadd.f32 %v564, %v1603
      %v1605 = vpop.f32.mrb[0].mxu0
      %v1606 = vadd.f32 %v568, %v1605
      %1607 = vdwg.mxu0
      %1608 = vmatprep.subr.bf16.mxu0 %v1234
      %1609 = vmatpush1.bf16.msra.mxu0 %v1233
      %1610 = vmatprep.subr.bf16.mxu0 %v1238
      %1611 = vmatpush1.bf16.msra.mxu0 %v1237
      %1612 = vmatprep.subr.bf16.mxu0 %v1242
      %1613 = vmatpush1.bf16.msra.mxu0 %v1241
      %1614 = vmatprep.subr.bf16.mxu0 %v1246
      %1615 = vmatpush1.bf16.msra.mxu0 %v1245
      %1616 = vmatprep.subr.bf16.mxu0 %v1250
      %1617 = vmatpush1.bf16.msra.mxu0 %v1249
      %1618 = vmatprep.subr.bf16.mxu0 %v1254
      %1619 = vmatpush1.bf16.msra.mxu0 %v1253
      %1620 = vmatprep.subr.bf16.mxu0 %v1258
      %1621 = vmatpush1.bf16.msra.mxu0 %v1257
      %1622 = vmatprep.subr.bf16.mxu0 %v1262
      %1623 = vmatpush1.bf16.msra.mxu0 %v1261
      %1624 = vmatprep.subr.bf16.mxu0 %v1266
      %1625 = vmatpush1.bf16.msra.mxu0 %v1265
      %1626 = vmatprep.subr.bf16.mxu0 %v1270
      %1627 = vmatpush1.bf16.msra.mxu0 %v1269
      %1628 = vmatprep.subr.bf16.mxu0 %v1274
      %1629 = vmatpush1.bf16.msra.mxu0 %v1273
      %1630 = vmatprep.subr.bf16.mxu0 %v1278
      %1631 = vmatpush1.bf16.msra.mxu0 %v1277
      %1632 = vmatprep.subr.bf16.mxu0 %v1282
      %1633 = vmatpush1.bf16.msra.mxu0 %v1281
      %1634 = vmatprep.subr.bf16.mxu0 %v1286
      %1635 = vmatpush1.bf16.msra.mxu0 %v1285
      %1636 = vmatprep.subr.bf16.mxu0 %v1290
      %1637 = vmatpush1.bf16.msra.mxu0 %v1289
      %1638 = vmatprep.subr.bf16.mxu0 %v1294
      %1639 = vmatpush1.bf16.msra.mxu0 %v1293
      %1640 = vmatprep.mubr.bf16.mxu0 %v359
      %1641 = vmatmul.mubr.bf16.gmra.mrb[0].mxu0 %v358
      %v1642 = vpop.f32.mrb[0].mxu0
      %v1643 = vadd.f32 %v1600, %v1642
      %v1644 = vpop.f32.mrb[0].mxu0
      %v1645 = vadd.f32 %v1602, %v1644
      %v1646 = vpop.f32.mrb[0].mxu0
      %v1647 = vadd.f32 %v1604, %v1646
      %v1648 = vpop.f32.mrb[0].mxu0
      %v1649 = vadd.f32 %v1606, %v1648
      %1650 = vdwg.mxu0
      %1651 = vmatprep.subr.bf16.mxu0 %v1298
      %1652 = vmatpush1.bf16.msra.mxu0 %v1297
      %1653 = vmatprep.subr.bf16.mxu0 %v1302
      %1654 = vmatpush1.bf16.msra.mxu0 %v1301
      %1655 = vmatprep.subr.bf16.mxu0 %v1306
      %1656 = vmatpush1.bf16.msra.mxu0 %v1305
      %1657 = vmatprep.subr.bf16.mxu0 %v1310
      %1658 = vmatpush1.bf16.msra.mxu0 %v1309
      %1659 = vmatprep.subr.bf16.mxu0 %v1314
      %1660 = vmatpush1.bf16.msra.mxu0 %v1313
      %1661 = vmatprep.subr.bf16.mxu0 %v1318
      %1662 = vmatpush1.bf16.msra.mxu0 %v1317
      %1663 = vmatprep.subr.bf16.mxu0 %v1322
      %1664 = vmatpush1.bf16.msra.mxu0 %v1321
      %1665 = vmatprep.subr.bf16.mxu0 %v1326
      %1666 = vmatpush1.bf16.msra.mxu0 %v1325
      %1667 = vmatprep.subr.bf16.mxu0 %v1330
      %1668 = vmatpush1.bf16.msra.mxu0 %v1329
      %1669 = vmatprep.subr.bf16.mxu0 %v1334
      %1670 = vmatpush1.bf16.msra.mxu0 %v1333
      %1671 = vmatprep.subr.bf16.mxu0 %v1338
      %1672 = vmatpush1.bf16.msra.mxu0 %v1337
      %1673 = vmatprep.subr.bf16.mxu0 %v1342
      %1674 = vmatpush1.bf16.msra.mxu0 %v1341
      %1675 = vmatprep.subr.bf16.mxu0 %v1346
      %1676 = vmatpush1.bf16.msra.mxu0 %v1345
      %1677 = vmatprep.subr.bf16.mxu0 %v1350
      %1678 = vmatpush1.bf16.msra.mxu0 %v1349
      %1679 = vmatprep.subr.bf16.mxu0 %v1354
      %1680 = vmatpush1.bf16.msra.mxu0 %v1353
      %1681 = vmatprep.subr.bf16.mxu0 %v1358
      %1682 = vmatpush1.bf16.msra.mxu0 %v1357
      %1683 = vmatprep.mubr.bf16.mxu0 %v361
      %1684 = vmatmul.mubr.bf16.gmra.mrb[0].mxu0 %v360
      %v1685 = vpop.f32.mrb[0].mxu0
      %v1686 = vadd.f32 %v1643, %v1685
      %v1687 = vpop.f32.mrb[0].mxu0
      %v1688 = vadd.f32 %v1645, %v1687
      %v1689 = vpop.f32.mrb[0].mxu0
      %v1690 = vadd.f32 %v1647, %v1689
      %v1691 = vpop.f32.mrb[0].mxu0
      %v1692 = vadd.f32 %v1649, %v1691
      %1693 = vdwg.mxu0
      %1694 = vmatprep.subr.bf16.mxu0 %v1362
      %1695 = vmatpush1.bf16.msra.mxu0 %v1361
      %1696 = vmatprep.subr.bf16.mxu0 0
      %1697 = vmatpush1.bf16.msra.mxu0 0
      %1698 = vmatprep.subr.bf16.mxu0 0
      %1699 = vmatpush1.bf16.msra.mxu0 0
      %1700 = vmatprep.subr.bf16.mxu0 0
      %1701 = vmatpush1.bf16.msra.mxu0 0
      %1702 = vmatprep.subr.bf16.mxu0 0
      %1703 = vmatpush1.bf16.msra.mxu0 0
      %1704 = vmatprep.subr.bf16.mxu0 0
      %1705 = vmatpush1.bf16.msra.mxu0 0
      %1706 = vmatprep.subr.bf16.mxu0 0
      %1707 = vmatpush1.bf16.msra.mxu0 0
      %1708 = vmatprep.subr.bf16.mxu0 0
      %1709 = vmatpush1.bf16.msra.mxu0 0
      %1710 = vmatprep.subr.bf16.mxu0 0
      %1711 = vmatpush1.bf16.msra.mxu0 0
      %1712 = vmatprep.subr.bf16.mxu0 0
      %1713 = vmatpush1.bf16.msra.mxu0 0
      %1714 = vmatprep.subr.bf16.mxu0 0
      %1715 = vmatpush1.bf16.msra.mxu0 0
      %1716 = vmatprep.subr.bf16.mxu0 0
      %1717 = vmatpush1.bf16.msra.mxu0 0
      %1718 = vmatprep.subr.bf16.mxu0 0
      %1719 = vmatpush1.bf16.msra.mxu0 0
      %1720 = vmatprep.subr.bf16.mxu0 0
      %1721 = vmatpush1.bf16.msra.mxu0 0
      %1722 = vmatprep.subr.bf16.mxu0 0
      %1723 = vmatpush1.bf16.msra.mxu0 0
      %1724 = vmatprep.subr.bf16.mxu0 0
      %1725 = vmatpush1.bf16.msra.mxu0 0
      %1726 = vmatprep.mubr.bf16.mxu0 0
      %1727 = vmatmul.mubr.bf16.gmra.mrb[0].mxu0 %v1563
      %v1728 = vpop.f32.mrb[0].mxu0
      %v1729 = vadd.f32 %v1686, %v1728
      %v1730 = vpop.f32.mrb[0].mxu0
      %v1731 = vadd.f32 %v1688, %v1730
      %v1732 = vpop.f32.mrb[0].mxu0
      %v1733 = vadd.f32 %v1690, %v1732
      %v1734 = vpop.f32.mrb[0].mxu0
      %v1735 = vadd.f32 %v1692, %v1734
      %1736 = vdwg.mxu0
      %1737 = vmatprep.subr.bf16.mxu0 %v1172
      %1738 = vmatpush1.bf16.msra.mxu0 %v1171
      %1739 = vmatprep.subr.bf16.mxu0 %v1176
      %1740 = vmatpush1.bf16.msra.mxu0 %v1175
      %1741 = vmatprep.subr.bf16.mxu0 %v1180
      %1742 = vmatpush1.bf16.msra.mxu0 %v1179
      %1743 = vmatprep.subr.bf16.mxu0 %v1184
      %1744 = vmatpush1.bf16.msra.mxu0 %v1183
      %1745 = vmatprep.subr.bf16.mxu0 %v1188
      %1746 = vmatpush1.bf16.msra.mxu0 %v1187
      %1747 = vmatprep.subr.bf16.mxu0 %v1192
      %1748 = vmatpush1.bf16.msra.mxu0 %v1191
      %1749 = vmatprep.subr.bf16.mxu0 %v1196
      %1750 = vmatpush1.bf16.msra.mxu0 %v1195
      %1751 = vmatprep.subr.bf16.mxu0 %v1200
      %1752 = vmatpush1.bf16.msra.mxu0 %v1199
      %1753 = vmatprep.subr.bf16.mxu0 %v1204
      %1754 = vmatpush1.bf16.msra.mxu0 %v1203
      %1755 = vmatprep.subr.bf16.mxu0 %v1208
      %1756 = vmatpush1.bf16.msra.mxu0 %v1207
      %1757 = vmatprep.subr.bf16.mxu0 %v1212
      %1758 = vmatpush1.bf16.msra.mxu0 %v1211
      %1759 = vmatprep.subr.bf16.mxu0 %v1216
      %1760 = vmatpush1.bf16.msra.mxu0 %v1215
      %1761 = vmatprep.subr.bf16.mxu0 %v1220
      %1762 = vmatpush1.bf16.msra.mxu0 %v1219
      %1763 = vmatprep.subr.bf16.mxu0 %v1224
      %1764 = vmatpush1.bf16.msra.mxu0 %v1223
      %1765 = vmatprep.subr.bf16.mxu0 %v1228
      %1766 = vmatpush1.bf16.msra.mxu0 %v1227
      %1767 = vmatprep.subr.bf16.mxu0 %v1232
      %1768 = vmatpush1.bf16.msra.mxu0 %v1231
      %1769 = vmatprep.mubr.bf16.mxu0 %v357
      %1770 = vmatmul.mubr.bf16.gmra.mrb[0].mxu0 %v356
      %v1771 = vpop.f32.mrb[0].mxu0
      %v1772 = vadd.f32 %v572, %v1771
      %v1773 = vpop.f32.mrb[0].mxu0
      %v1774 = vadd.f32 %v576, %v1773
      %v1775 = vpop.f32.mrb[0].mxu0
      %v1776 = vadd.f32 %v572, %v1775
      %v1777 = vpop.f32.mrb[0].mxu0
      %v1778 = vadd.f32 %v576, %v1777
      %1779 = vdwg.mxu0
      %1780 = vmatprep.subr.bf16.mxu0 %v1236
      %1781 = vmatpush1.bf16.msra.mxu0 %v1235
      %1782 = vmatprep.subr.bf16.mxu0 %v1240
      %1783 = vmatpush1.bf16.msra.mxu0 %v1239
      %1784 = vmatprep.subr.bf16.mxu0 %v1244
      %1785 = vmatpush1.bf16.msra.mxu0 %v1243
      %1786 = vmatprep.subr.bf16.mxu0 %v1248
      %1787 = vmatpush1.bf16.msra.mxu0 %v1247
      %1788 = vmatprep.subr.bf16.mxu0 %v1252
      %1789 = vmatpush1.bf16.msra.mxu0 %v1251
      %1790 = vmatprep.subr.bf16.mxu0 %v1256
      %1791 = vmatpush1.bf16.msra.mxu0 %v1255
      %1792 = vmatprep.subr.bf16.mxu0 %v1260
      %1793 = vmatpush1.bf16.msra.mxu0 %v1259
      %1794 = vmatprep.subr.bf16.mxu0 %v1264
      %1795 = vmatpush1.bf16.msra.mxu0 %v1263
      %1796 = vmatprep.subr.bf16.mxu0 %v1268
      %1797 = vmatpush1.bf16.msra.mxu0 %v1267
      %1798 = vmatprep.subr.bf16.mxu0 %v1272
      %1799 = vmatpush1.bf16.msra.mxu0 %v1271
      %1800 = vmatprep.subr.bf16.mxu0 %v1276
      %1801 = vmatpush1.bf16.msra.mxu0 %v1275
      %1802 = vmatprep.subr.bf16.mxu0 %v1280
      %1803 = vmatpush1.bf16.msra.mxu0 %v1279
      %1804 = vmatprep.subr.bf16.mxu0 %v1284
      %1805 = vmatpush1.bf16.msra.mxu0 %v1283
      %1806 = vmatprep.subr.bf16.mxu0 %v1288
      %1807 = vmatpush1.bf16.msra.mxu0 %v1287
      %1808 = vmatprep.subr.bf16.mxu0 %v1292
      %1809 = vmatpush1.bf16.msra.mxu0 %v1291
      %1810 = vmatprep.subr.bf16.mxu0 %v1296
      %1811 = vmatpush1.bf16.msra.mxu0 %v1295
      %1812 = vmatprep.mubr.bf16.mxu0 %v359
      %1813 = vmatmul.mubr.bf16.gmra.mrb[0].mxu0 %v358
      %v1814 = vpop.f32.mrb[0].mxu0
      %v1815 = vadd.f32 %v1772, %v1814
      %v1816 = vpop.f32.mrb[0].mxu0
      %v1817 = vadd.f32 %v1774, %v1816
      %v1818 = vpop.f32.mrb[0].mxu0
      %v1819 = vadd.f32 %v1776, %v1818
      %v1820 = vpop.f32.mrb[0].mxu0
      %v1821 = vadd.f32 %v1778, %v1820
      %1822 = vdwg.mxu0
      %1823 = vmatprep.subr.bf16.mxu0 %v1300
      %1824 = vmatpush1.bf16.msra.mxu0 %v1299
      %1825 = vmatprep.subr.bf16.mxu0 %v1304
      %1826 = vmatpush1.bf16.msra.mxu0 %v1303
      %1827 = vmatprep.subr.bf16.mxu0 %v1308
      %1828 = vmatpush1.bf16.msra.mxu0 %v1307
      %1829 = vmatprep.subr.bf16.mxu0 %v1312
      %1830 = vmatpush1.bf16.msra.mxu0 %v1311
      %1831 = vmatprep.subr.bf16.mxu0 %v1316
      %1832 = vmatpush1.bf16.msra.mxu0 %v1315
      %1833 = vmatprep.subr.bf16.mxu0 %v1320
      %1834 = vmatpush1.bf16.msra.mxu0 %v1319
      %1835 = vmatprep.subr.bf16.mxu0 %v1324
      %1836 = vmatpush1.bf16.msra.mxu0 %v1323
      %1837 = vmatprep.subr.bf16.mxu0 %v1328
      %1838 = vmatpush1.bf16.msra.mxu0 %v1327
      %1839 = vmatprep.subr.bf16.mxu0 %v1332
      %1840 = vmatpush1.bf16.msra.mxu0 %v1331
      %1841 = vmatprep.subr.bf16.mxu0 %v1336
      %1842 = vmatpush1.bf16.msra.mxu0 %v1335
      %1843 = vmatprep.subr.bf16.mxu0 %v1340
      %1844 = vmatpush1.bf16.msra.mxu0 %v1339
      %1845 = vmatprep.subr.bf16.mxu0 %v1344
      %1846 = vmatpush1.bf16.msra.mxu0 %v1343
      %1847 = vmatprep.subr.bf16.mxu0 %v1348
      %1848 = vmatpush1.bf16.msra.mxu0 %v1347
      %1849 = vmatprep.subr.bf16.mxu0 %v1352
      %1850 = vmatpush1.bf16.msra.mxu0 %v1351
      %1851 = vmatprep.subr.bf16.mxu0 %v1356
      %1852 = vmatpush1.bf16.msra.mxu0 %v1355
      %1853 = vmatprep.subr.bf16.mxu0 %v1360
      %1854 = vmatpush1.bf16.msra.mxu0 %v1359
      %1855 = vmatprep.mubr.bf16.mxu0 %v361
      %1856 = vmatmul.mubr.bf16.gmra.mrb[0].mxu0 %v360
      %v1857 = vpop.f32.mrb[0].mxu0
      %v1858 = vadd.f32 %v1815, %v1857
      %v1859 = vpop.f32.mrb[0].mxu0
      %v1860 = vadd.f32 %v1817, %v1859
      %v1861 = vpop.f32.mrb[0].mxu0
      %v1862 = vadd.f32 %v1819, %v1861
      %v1863 = vpop.f32.mrb[0].mxu0
      %v1864 = vadd.f32 %v1821, %v1863
      %1865 = vdwg.mxu0
      %1866 = vmatprep.subr.bf16.mxu0 %v1364
      %1867 = vmatpush1.bf16.msra.mxu0 %v1363
      %1868 = vmatprep.subr.bf16.mxu0 0
      %1869 = vmatpush1.bf16.msra.mxu0 0
      %1870 = vmatprep.subr.bf16.mxu0 0
      %1871 = vmatpush1.bf16.msra.mxu0 0
      %1872 = vmatprep.subr.bf16.mxu0 0
      %1873 = vmatpush1.bf16.msra.mxu0 0
      %1874 = vmatprep.subr.bf16.mxu0 0
      %1875 = vmatpush1.bf16.msra.mxu0 0
      %1876 = vmatprep.subr.bf16.mxu0 0
      %1877 = vmatpush1.bf16.msra.mxu0 0
      %1878 = vmatprep.subr.bf16.mxu0 0
      %1879 = vmatpush1.bf16.msra.mxu0 0
      %1880 = vmatprep.subr.bf16.mxu0 0
      %1881 = vmatpush1.bf16.msra.mxu0 0
      %1882 = vmatprep.subr.bf16.mxu0 0
      %1883 = vmatpush1.bf16.msra.mxu0 0
      %1884 = vmatprep.subr.bf16.mxu0 0
      %1885 = vmatpush1.bf16.msra.mxu0 0
      %1886 = vmatprep.subr.bf16.mxu0 0
      %1887 = vmatpush1.bf16.msra.mxu0 0
      %1888 = vmatprep.subr.bf16.mxu0 0
      %1889 = vmatpush1.bf16.msra.mxu0 0
      %1890 = vmatprep.subr.bf16.mxu0 0
      %1891 = vmatpush1.bf16.msra.mxu0 0
      %1892 = vmatprep.subr.bf16.mxu0 0
      %1893 = vmatpush1.bf16.msra.mxu0 0
      %1894 = vmatprep.subr.bf16.mxu0 0
      %1895 = vmatpush1.bf16.msra.mxu0 0
      %1896 = vmatprep.subr.bf16.mxu0 0
      %1897 = vmatpush1.bf16.msra.mxu0 0
      %1898 = vmatprep.mubr.bf16.mxu0 0
      %1899 = vmatmul.mubr.bf16.gmra.mrb[0].mxu0 %v1563
      %v1900 = vpop.f32.mrb[0].mxu0
      %v1901 = vadd.f32 %v1858, %v1900
      %v1902 = vpop.f32.mrb[0].mxu0
      %v1903 = vadd.f32 %v1860, %v1902
      %v1904 = vpop.f32.mrb[0].mxu0
      %v1905 = vadd.f32 %v1862, %v1904
      %v1906 = vpop.f32.mrb[0].mxu0
      %v1907 = vadd.f32 %v1864, %v1906
      %1908 = vdwg.mxu0
      %v1909 = vmul.f32 %v1729, 0.2
      %v1910 = vmul.f32 %v1731, 0.2
      %v1911 = vmul.f32 %v1901, 0.2
      %v1912 = vmul.f32 %v1903, 0.2
      %v1913 = vmul.f32 %v1733, 0.2
      %v1914 = vmul.f32 %v1735, 0.2
      %v1915 = vmul.f32 %v1905, 0.2
      %v1916 = vmul.f32 %v1907, 0.2
      %v1917 = vmax.f32 %v1729, %v1909
      %v1918 = vmax.f32 %v1731, %v1910
      %v1919 = vmax.f32 %v1901, %v1911
      %v1920 = vmax.f32 %v1903, %v1912
      %v1921 = vmax.f32 %v1733, %v1913
      %v1922 = vmax.f32 %v1735, %v1914
      %v1923 = vmax.f32 %v1905, %v1915
      %v1924 = vmax.f32 %v1907, %v1916
      %v1925 = vpack.c.bf16 %v1921, %v1917
      %v1926 = vpack.c.bf16 %v1922, %v1918
      %v1927 = vpack.c.bf16 %v1923, %v1919
      %v1928 = vpack.c.bf16 %v1924, %v1920
      %v1929 = vld [vmem:[%s3] sm:$0xff]
      %v1930 = vld [vmem:[%s3 + $0x8] sm:$0xff]
      %v1931 = vld [vmem:[%s3 + $0x10] sm:$0xff]
      %v1932 = vld [vmem:[%s3 + $0x18] sm:$0xff]
      %v1933 = vld [vmem:[%s3 + $0x20] sm:$0xff]
      %v1934 = vld [vmem:[%s3 + $0x28] sm:$0xff]
      %v1935 = vld [vmem:[%s3 + $0x30] sm:$0xff]
      %v1936 = vld [vmem:[%s3 + $0x38] sm:$0xff]
      %v1937 = vld [vmem:[%s3 + $0x40] sm:$0xff]
      %v1938 = vld [vmem:[%s3 + $0x48] sm:$0xff]
      %v1939 = vld [vmem:[%s3 + $0x50] sm:$0xff]
      %v1940 = vld [vmem:[%s3 + $0x58] sm:$0xff]
      %v1941 = vld [vmem:[%s3 + $0x60] sm:$0xff]
      %v1942 = vld [vmem:[%s3 + $0x68] sm:$0xff]
      %v1943 = vld [vmem:[%s3 + $0x70] sm:$0xff]
      %v1944 = vld [vmem:[%s3 + $0x78] sm:$0xff]
      %v1945 = vld [vmem:[%s3 + $0x80] sm:$0xff]
      %v1946 = vld [vmem:[%s3 + $0x88] sm:$0xff]
      %v1947 = vld [vmem:[%s3 + $0x90] sm:$0xff]
      %v1948 = vld [vmem:[%s3 + $0x98] sm:$0xff]
      %v1949 = vld [vmem:[%s3 + $0xa0] sm:$0xff]
      %v1950 = vld [vmem:[%s3 + $0xa8] sm:$0xff]
      %v1951 = vld [vmem:[%s3 + $0xb0] sm:$0xff]
      %v1952 = vld [vmem:[%s3 + $0xb8] sm:$0xff]
      %v1953 = vld [vmem:[%s3 + $0xc0] sm:$0xff]
      %v1954 = vld [vmem:[%s3 + $0xc8] sm:$0xff]
      %v1955 = vld [vmem:[%s3 + $0xd0] sm:$0xff]
      %v1956 = vld [vmem:[%s3 + $0xd8] sm:$0xff]
      %v1957 = vld [vmem:[%s3 + $0xe0] sm:$0xff]
      %v1958 = vld [vmem:[%s3 + $0xe8] sm:$0xff]
      %v1959 = vld [vmem:[%s3 + $0xf0] sm:$0xff]
      %v1960 = vld [vmem:[%s3 + $0xf8] sm:$0xff]
      %v1961 = vld [vmem:[%s3 + $0x100] sm:$0xff]
      %v1962 = vld [vmem:[%s3 + $0x108] sm:$0xff]
      %v1963 = vld [vmem:[%s3 + $0x110] sm:$0xff]
      %v1964 = vld [vmem:[%s3 + $0x118] sm:$0xff]
      %v1965 = vld [vmem:[%s3 + $0x120] sm:$0xff]
      %v1966 = vld [vmem:[%s3 + $0x128] sm:$0xff]
      %v1967 = vld [vmem:[%s3 + $0x130] sm:$0xff]
      %v1968 = vld [vmem:[%s3 + $0x138] sm:$0xff]
      %v1969 = vld [vmem:[%s3 + $0x140] sm:$0xff]
      %v1970 = vld [vmem:[%s3 + $0x148] sm:$0xff]
      %v1971 = vld [vmem:[%s3 + $0x150] sm:$0xff]
      %v1972 = vld [vmem:[%s3 + $0x158] sm:$0xff]
      %v1973 = vld [vmem:[%s3 + $0x160] sm:$0xff]
      %v1974 = vld [vmem:[%s3 + $0x168] sm:$0xff]
      %v1975 = vld [vmem:[%s3 + $0x170] sm:$0xff]
      %v1976 = vld [vmem:[%s3 + $0x178] sm:$0xff]
      %v1977 = vld [vmem:[%s3 + $0x180] sm:$0xff]
      %v1978 = vld [vmem:[%s3 + $0x188] sm:$0xff]
      %v1979 = vld [vmem:[%s3 + $0x190] sm:$0xff]
      %v1980 = vld [vmem:[%s3 + $0x198] sm:$0xff]
      %v1981 = vld [vmem:[%s3 + $0x1a0] sm:$0xff]
      %v1982 = vld [vmem:[%s3 + $0x1a8] sm:$0xff]
      %v1983 = vld [vmem:[%s3 + $0x1b0] sm:$0xff]
      %v1984 = vld [vmem:[%s3 + $0x1b8] sm:$0xff]
      %v1985 = vld [vmem:[%s3 + $0x1c0] sm:$0xff]
      %v1986 = vld [vmem:[%s3 + $0x1c8] sm:$0xff]
      %v1987 = vld [vmem:[%s3 + $0x1d0] sm:$0xff]
      %v1988 = vld [vmem:[%s3 + $0x1d8] sm:$0xff]
      %v1989 = vld [vmem:[%s3 + $0x1e0] sm:$0xff]
      %v1990 = vld [vmem:[%s3 + $0x1e8] sm:$0xff]
      %v1991 = vld [vmem:[%s3 + $0x1f0] sm:$0xff]
      %v1992 = vld [vmem:[%s3 + $0x1f8] sm:$0xff]
      %v1993 = vld [vmem:[%s4] sm:$0x3]
      %v1995 = vlaneseq
      %v1996 = vshrl.u32 %v1995, 7
      %v1997 = vsub.s32 0, %v1996
      %v1998 = vrot.slane %v1993, %v1997
      %v1999 = vlaneseq
      %v2000 = vshrl.u32 %v1999, 7
      %v2001 = vsub.s32 1, %v2000
      %v2002 = vrot.slane %v1993, %v2001
      %v2069 = vunpack.c.l.b16 %v1929
      %v2070 = vunpack.c.h.b16 %v1929
      %v2071 = vunpack.c.l.b16 %v1930
      %v2072 = vunpack.c.h.b16 %v1930
      %v2073 = vunpack.c.l.b16 %v1931
      %v2074 = vunpack.c.h.b16 %v1931
      %v2075 = vunpack.c.l.b16 %v1932
      %v2076 = vunpack.c.h.b16 %v1932
      %v2077 = vunpack.c.l.b16 %v1933
      %v2078 = vunpack.c.h.b16 %v1933
      %v2079 = vunpack.c.l.b16 %v1934
      %v2080 = vunpack.c.h.b16 %v1934
      %v2081 = vunpack.c.l.b16 %v1935
      %v2082 = vunpack.c.h.b16 %v1935
      %v2083 = vunpack.c.l.b16 %v1936
      %v2084 = vunpack.c.h.b16 %v1936
      %v2085 = vunpack.c.l.b16 %v1937
      %v2086 = vunpack.c.h.b16 %v1937
      %v2087 = vunpack.c.l.b16 %v1938
      %v2088 = vunpack.c.h.b16 %v1938
      %v2089 = vunpack.c.l.b16 %v1939
      %v2090 = vunpack.c.h.b16 %v1939
      %v2091 = vunpack.c.l.b16 %v1940
      %v2092 = vunpack.c.h.b16 %v1940
      %v2093 = vunpack.c.l.b16 %v1941
      %v2094 = vunpack.c.h.b16 %v1941
      %v2095 = vunpack.c.l.b16 %v1942
      %v2096 = vunpack.c.h.b16 %v1942
      %v2097 = vunpack.c.l.b16 %v1943
      %v2098 = vunpack.c.h.b16 %v1943
      %v2099 = vunpack.c.l.b16 %v1944
      %v2100 = vunpack.c.h.b16 %v1944
      %v2101 = vunpack.c.l.b16 %v1945
      %v2102 = vunpack.c.h.b16 %v1945
      %v2103 = vunpack.c.l.b16 %v1946
      %v2104 = vunpack.c.h.b16 %v1946
      %v2105 = vunpack.c.l.b16 %v1947
      %v2106 = vunpack.c.h.b16 %v1947
      %v2107 = vunpack.c.l.b16 %v1948
      %v2108 = vunpack.c.h.b16 %v1948
      %v2109 = vunpack.c.l.b16 %v1949
      %v2110 = vunpack.c.h.b16 %v1949
      %v2111 = vunpack.c.l.b16 %v1950
      %v2112 = vunpack.c.h.b16 %v1950
      %v2113 = vunpack.c.l.b16 %v1951
      %v2114 = vunpack.c.h.b16 %v1951
      %v2115 = vunpack.c.l.b16 %v1952
      %v2116 = vunpack.c.h.b16 %v1952
      %v2117 = vunpack.c.l.b16 %v1953
      %v2118 = vunpack.c.h.b16 %v1953
      %v2119 = vunpack.c.l.b16 %v1954
      %v2120 = vunpack.c.h.b16 %v1954
      %v2121 = vunpack.c.l.b16 %v1955
      %v2122 = vunpack.c.h.b16 %v1955
      %v2123 = vunpack.c.l.b16 %v1956
      %v2124 = vunpack.c.h.b16 %v1956
      %v2125 = vunpack.c.l.b16 %v1957
      %v2126 = vunpack.c.h.b16 %v1957
      %v2127 = vunpack.c.l.b16 %v1958
      %v2128 = vunpack.c.h.b16 %v1958
      %v2129 = vunpack.c.l.b16 %v1959
      %v2130 = vunpack.c.h.b16 %v1959
      %v2131 = vunpack.c.l.b16 %v1960
      %v2132 = vunpack.c.h.b16 %v1960
      %v2133 = vunpack.c.l.b16 %v1961
      %v2134 = vunpack.c.h.b16 %v1961
      %v2135 = vunpack.c.l.b16 %v1962
      %v2136 = vunpack.c.h.b16 %v1962
      %v2137 = vunpack.c.l.b16 %v1963
      %v2138 = vunpack.c.h.b16 %v1963
      %v2139 = vunpack.c.l.b16 %v1964
      %v2140 = vunpack.c.h.b16 %v1964
      %v2141 = vunpack.c.l.b16 %v1965
      %v2142 = vunpack.c.h.b16 %v1965
      %v2143 = vunpack.c.l.b16 %v1966
      %v2144 = vunpack.c.h.b16 %v1966
      %v2145 = vunpack.c.l.b16 %v1967
      %v2146 = vunpack.c.h.b16 %v1967
      %v2147 = vunpack.c.l.b16 %v1968
      %v2148 = vunpack.c.h.b16 %v1968
      %v2149 = vunpack.c.l.b16 %v1969
      %v2150 = vunpack.c.h.b16 %v1969
      %v2151 = vunpack.c.l.b16 %v1970
      %v2152 = vunpack.c.h.b16 %v1970
      %v2153 = vunpack.c.l.b16 %v1971
      %v2154 = vunpack.c.h.b16 %v1971
      %v2155 = vunpack.c.l.b16 %v1972
      %v2156 = vunpack.c.h.b16 %v1972
      %v2157 = vunpack.c.l.b16 %v1973
      %v2158 = vunpack.c.h.b16 %v1973
      %v2159 = vunpack.c.l.b16 %v1974
      %v2160 = vunpack.c.h.b16 %v1974
      %v2161 = vunpack.c.l.b16 %v1975
      %v2162 = vunpack.c.h.b16 %v1975
      %v2163 = vunpack.c.l.b16 %v1976
      %v2164 = vunpack.c.h.b16 %v1976
      %v2165 = vunpack.c.l.b16 %v1977
      %v2166 = vunpack.c.h.b16 %v1977
      %v2167 = vunpack.c.l.b16 %v1978
      %v2168 = vunpack.c.h.b16 %v1978
      %v2169 = vunpack.c.l.b16 %v1979
      %v2170 = vunpack.c.h.b16 %v1979
      %v2171 = vunpack.c.l.b16 %v1980
      %v2172 = vunpack.c.h.b16 %v1980
      %v2173 = vunpack.c.l.b16 %v1981
      %v2174 = vunpack.c.h.b16 %v1981
      %v2175 = vunpack.c.l.b16 %v1982
      %v2176 = vunpack.c.h.b16 %v1982
      %v2177 = vunpack.c.l.b16 %v1983
      %v2178 = vunpack.c.h.b16 %v1983
      %v2179 = vunpack.c.l.b16 %v1984
      %v2180 = vunpack.c.h.b16 %v1984
      %v2181 = vunpack.c.l.b16 %v1985
      %v2182 = vunpack.c.h.b16 %v1985
      %v2183 = vunpack.c.l.b16 %v1986
      %v2184 = vunpack.c.h.b16 %v1986
      %v2185 = vunpack.c.l.b16 %v1987
      %v2186 = vunpack.c.h.b16 %v1987
      %v2187 = vunpack.c.l.b16 %v1988
      %v2188 = vunpack.c.h.b16 %v1988
      %v2189 = vunpack.c.l.b16 %v1989
      %v2190 = vunpack.c.h.b16 %v1989
      %v2191 = vunpack.c.l.b16 %v1990
      %v2192 = vunpack.c.h.b16 %v1990
      %v2193 = vunpack.c.l.b16 %v1991
      %v2194 = vunpack.c.h.b16 %v1991
      %v2195 = vunpack.c.l.b16 %v1992
      %v2196 = vunpack.c.h.b16 %v1992
      %v2197 = vpack.c.b16 %v2071, %v2069
      %v2198 = vpack.c.b16 %v2072, %v2070
      %v2199 = vpack.c.b16 %v2075, %v2073
      %v2200 = vpack.c.b16 %v2076, %v2074
      %v2201 = vpack.c.b16 %v2079, %v2077
      %v2202 = vpack.c.b16 %v2080, %v2078
      %v2203 = vpack.c.b16 %v2083, %v2081
      %v2204 = vpack.c.b16 %v2084, %v2082
      %v2205 = vpack.c.b16 %v2087, %v2085
      %v2206 = vpack.c.b16 %v2088, %v2086
      %v2207 = vpack.c.b16 %v2091, %v2089
      %v2208 = vpack.c.b16 %v2092, %v2090
      %v2209 = vpack.c.b16 %v2095, %v2093
      %v2210 = vpack.c.b16 %v2096, %v2094
      %v2211 = vpack.c.b16 %v2099, %v2097
      %v2212 = vpack.c.b16 %v2100, %v2098
      %v2213 = vpack.c.b16 %v2103, %v2101
      %v2214 = vpack.c.b16 %v2104, %v2102
      %v2215 = vpack.c.b16 %v2107, %v2105
      %v2216 = vpack.c.b16 %v2108, %v2106
      %v2217 = vpack.c.b16 %v2111, %v2109
      %v2218 = vpack.c.b16 %v2112, %v2110
      %v2219 = vpack.c.b16 %v2115, %v2113
      %v2220 = vpack.c.b16 %v2116, %v2114
      %v2221 = vpack.c.b16 %v2119, %v2117
      %v2222 = vpack.c.b16 %v2120, %v2118
      %v2223 = vpack.c.b16 %v2123, %v2121
      %v2224 = vpack.c.b16 %v2124, %v2122
      %v2225 = vpack.c.b16 %v2127, %v2125
      %v2226 = vpack.c.b16 %v2128, %v2126
      %v2227 = vpack.c.b16 %v2131, %v2129
      %v2228 = vpack.c.b16 %v2132, %v2130
      %v2229 = vpack.c.b16 %v2135, %v2133
      %v2230 = vpack.c.b16 %v2136, %v2134
      %v2231 = vpack.c.b16 %v2139, %v2137
      %v2232 = vpack.c.b16 %v2140, %v2138
      %v2233 = vpack.c.b16 %v2143, %v2141
      %v2234 = vpack.c.b16 %v2144, %v2142
      %v2235 = vpack.c.b16 %v2147, %v2145
      %v2236 = vpack.c.b16 %v2148, %v2146
      %v2237 = vpack.c.b16 %v2151, %v2149
      %v2238 = vpack.c.b16 %v2152, %v2150
      %v2239 = vpack.c.b16 %v2155, %v2153
      %v2240 = vpack.c.b16 %v2156, %v2154
      %v2241 = vpack.c.b16 %v2159, %v2157
      %v2242 = vpack.c.b16 %v2160, %v2158
      %v2243 = vpack.c.b16 %v2163, %v2161
      %v2244 = vpack.c.b16 %v2164, %v2162
      %v2245 = vpack.c.b16 %v2167, %v2165
      %v2246 = vpack.c.b16 %v2168, %v2166
      %v2247 = vpack.c.b16 %v2171, %v2169
      %v2248 = vpack.c.b16 %v2172, %v2170
      %v2249 = vpack.c.b16 %v2175, %v2173
      %v2250 = vpack.c.b16 %v2176, %v2174
      %v2251 = vpack.c.b16 %v2179, %v2177
      %v2252 = vpack.c.b16 %v2180, %v2178
      %v2253 = vpack.c.b16 %v2183, %v2181
      %v2254 = vpack.c.b16 %v2184, %v2182
      %v2255 = vpack.c.b16 %v2187, %v2185
      %v2256 = vpack.c.b16 %v2188, %v2186
      %v2257 = vpack.c.b16 %v2191, %v2189
      %v2258 = vpack.c.b16 %v2192, %v2190
      %v2259 = vpack.c.b16 %v2195, %v2193
      %v2260 = vpack.c.b16 %v2196, %v2194
      %2325 = vmatprep.subr.bf16.mxu0 %v2198
      %2326 = vmatpush1.bf16.msra.mxu0 %v2197
      %2327 = vmatprep.subr.bf16.mxu0 %v2200
      %2328 = vmatpush1.bf16.msra.mxu0 %v2199
      %2329 = vmatprep.subr.bf16.mxu0 %v2202
      %2330 = vmatpush1.bf16.msra.mxu0 %v2201
      %2331 = vmatprep.subr.bf16.mxu0 %v2204
      %2332 = vmatpush1.bf16.msra.mxu0 %v2203
      %2333 = vmatprep.subr.bf16.mxu0 %v2206
      %2334 = vmatpush1.bf16.msra.mxu0 %v2205
      %2335 = vmatprep.subr.bf16.mxu0 %v2208
      %2336 = vmatpush1.bf16.msra.mxu0 %v2207
      %2337 = vmatprep.subr.bf16.mxu0 %v2210
      %2338 = vmatpush1.bf16.msra.mxu0 %v2209
      %2339 = vmatprep.subr.bf16.mxu0 %v2212
      %2340 = vmatpush1.bf16.msra.mxu0 %v2211
      %2341 = vmatprep.subr.bf16.mxu0 %v2214
      %2342 = vmatpush1.bf16.msra.mxu0 %v2213
      %2343 = vmatprep.subr.bf16.mxu0 %v2216
      %2344 = vmatpush1.bf16.msra.mxu0 %v2215
      %2345 = vmatprep.subr.bf16.mxu0 %v2218
      %2346 = vmatpush1.bf16.msra.mxu0 %v2217
      %2347 = vmatprep.subr.bf16.mxu0 %v2220
      %2348 = vmatpush1.bf16.msra.mxu0 %v2219
      %2349 = vmatprep.subr.bf16.mxu0 %v2222
      %2350 = vmatpush1.bf16.msra.mxu0 %v2221
      %2351 = vmatprep.subr.bf16.mxu0 %v2224
      %2352 = vmatpush1.bf16.msra.mxu0 %v2223
      %2353 = vmatprep.subr.bf16.mxu0 %v2226
      %2354 = vmatpush1.bf16.msra.mxu0 %v2225
      %2355 = vmatprep.subr.bf16.mxu0 %v2228
      %2356 = vmatpush1.bf16.msra.mxu0 %v2227
      %2357 = vmatprep.mubr.bf16.mxu0 %v1926
      %2358 = vmatmul.mubr.bf16.gmra.mrb[0].mxu0 %v1925
      %v2359 = vpop.f32.mrb[0].mxu0
      %v2360 = vadd.f32 %v1998, %v2359
      %v2361 = vpop.f32.mrb[0].mxu0
      %v2362 = vadd.f32 %v2002, %v2361
      %v2363 = vpop.f32.mrb[0].mxu0
      %v2364 = vadd.f32 %v1998, %v2363
      %v2365 = vpop.f32.mrb[0].mxu0
      %v2366 = vadd.f32 %v2002, %v2365
      %2367 = vdwg.mxu0
      %2368 = vmatprep.subr.bf16.mxu0 %v2230
      %2369 = vmatpush1.bf16.msra.mxu0 %v2229
      %2370 = vmatprep.subr.bf16.mxu0 %v2232
      %2371 = vmatpush1.bf16.msra.mxu0 %v2231
      %2372 = vmatprep.subr.bf16.mxu0 %v2234
      %2373 = vmatpush1.bf16.msra.mxu0 %v2233
      %2374 = vmatprep.subr.bf16.mxu0 %v2236
      %2375 = vmatpush1.bf16.msra.mxu0 %v2235
      %2376 = vmatprep.subr.bf16.mxu0 %v2238
      %2377 = vmatpush1.bf16.msra.mxu0 %v2237
      %2378 = vmatprep.subr.bf16.mxu0 %v2240
      %2379 = vmatpush1.bf16.msra.mxu0 %v2239
      %2380 = vmatprep.subr.bf16.mxu0 %v2242
      %2381 = vmatpush1.bf16.msra.mxu0 %v2241
      %2382 = vmatprep.subr.bf16.mxu0 %v2244
      %2383 = vmatpush1.bf16.msra.mxu0 %v2243
      %2384 = vmatprep.subr.bf16.mxu0 %v2246
      %2385 = vmatpush1.bf16.msra.mxu0 %v2245
      %2386 = vmatprep.subr.bf16.mxu0 %v2248
      %2387 = vmatpush1.bf16.msra.mxu0 %v2247
      %2388 = vmatprep.subr.bf16.mxu0 %v2250
      %2389 = vmatpush1.bf16.msra.mxu0 %v2249
      %2390 = vmatprep.subr.bf16.mxu0 %v2252
      %2391 = vmatpush1.bf16.msra.mxu0 %v2251
      %2392 = vmatprep.subr.bf16.mxu0 %v2254
      %2393 = vmatpush1.bf16.msra.mxu0 %v2253
      %2394 = vmatprep.subr.bf16.mxu0 %v2256
      %2395 = vmatpush1.bf16.msra.mxu0 %v2255
      %2396 = vmatprep.subr.bf16.mxu0 %v2258
      %2397 = vmatpush1.bf16.msra.mxu0 %v2257
      %2398 = vmatprep.subr.bf16.mxu0 %v2260
      %2399 = vmatpush1.bf16.msra.mxu0 %v2259
      %2400 = vmatprep.mubr.bf16.mxu0 %v1928
      %2401 = vmatmul.mubr.bf16.gmra.mrb[0].mxu0 %v1927
      %v2402 = vpop.f32.mrb[0].mxu0
      %v2403 = vadd.f32 %v2360, %v2402
      %v2404 = vpop.f32.mrb[0].mxu0
      %v2405 = vadd.f32 %v2362, %v2404
      %v2406 = vpop.f32.mrb[0].mxu0
      %v2407 = vadd.f32 %v2364, %v2406
      %v2408 = vpop.f32.mrb[0].mxu0
      %v2409 = vadd.f32 %v2366, %v2408
      %2410 = vdwg.mxu0
      %v2411 = vmul.f32 %v2403, 0.2
      %v2412 = vmul.f32 %v2405, 0.2
      %v2413 = vmul.f32 %v2407, 0.2
      %v2414 = vmul.f32 %v2409, 0.2
      %v2415 = vmax.f32 %v2403, %v2411
      %v2416 = vmax.f32 %v2405, %v2412
      %v2417 = vmax.f32 %v2407, %v2413
      %v2418 = vmax.f32 %v2409, %v2414
      %v2419 = vpack.c.bf16 %v2417, %v2415
      %v2420 = vpack.c.bf16 %v2418, %v2416
      %v2421 = vld [vmem:[%s5] sm:$0xf]
      %v2422 = vld [vmem:[%s5 + $0x4] sm:$0xf]
      %v2423 = vld [vmem:[%s5 + $0x8] sm:$0xf]
      %v2424 = vld [vmem:[%s5 + $0xc] sm:$0xf]
      %v2425 = vld [vmem:[%s5 + $0x10] sm:$0xf]
      %v2426 = vld [vmem:[%s5 + $0x14] sm:$0xf]
      %v2427 = vld [vmem:[%s5 + $0x18] sm:$0xf]
      %v2428 = vld [vmem:[%s5 + $0x1c] sm:$0xf]
      %v2429 = vld [vmem:[%s5 + $0x20] sm:$0xf]
      %v2430 = vld [vmem:[%s5 + $0x24] sm:$0xf]
      %v2431 = vld [vmem:[%s5 + $0x28] sm:$0xf]
      %v2432 = vld [vmem:[%s5 + $0x2c] sm:$0xf]
      %v2433 = vld [vmem:[%s5 + $0x30] sm:$0xf]
      %v2434 = vld [vmem:[%s5 + $0x34] sm:$0xf]
      %v2435 = vld [vmem:[%s5 + $0x38] sm:$0xf]
      %v2436 = vld [vmem:[%s5 + $0x3c] sm:$0xf]
      %v2437 = vld [vmem:[%s5 + $0x40] sm:$0xf]
      %v2438 = vld [vmem:[%s5 + $0x44] sm:$0xf]
      %v2439 = vld [vmem:[%s5 + $0x48] sm:$0xf]
      %v2440 = vld [vmem:[%s5 + $0x4c] sm:$0xf]
      %v2441 = vld [vmem:[%s5 + $0x50] sm:$0xf]
      %v2442 = vld [vmem:[%s5 + $0x54] sm:$0xf]
      %v2443 = vld [vmem:[%s5 + $0x58] sm:$0xf]
      %v2444 = vld [vmem:[%s5 + $0x5c] sm:$0xf]
      %v2445 = vld [vmem:[%s5 + $0x60] sm:$0xf]
      %v2446 = vld [vmem:[%s5 + $0x64] sm:$0xf]
      %v2447 = vld [vmem:[%s5 + $0x68] sm:$0xf]
      %v2448 = vld [vmem:[%s5 + $0x6c] sm:$0xf]
      %v2449 = vld [vmem:[%s5 + $0x70] sm:$0xf]
      %v2450 = vld [vmem:[%s5 + $0x74] sm:$0xf]
      %v2451 = vld [vmem:[%s5 + $0x78] sm:$0xf]
      %v2452 = vld [vmem:[%s5 + $0x7c] sm:$0xf]
      %v2453 = vld [vmem:[%s6] sm:$0x1]
      %v2455 = vlaneseq
      %v2456 = vshrl.u32 %v2455, 7
      %v2457 = vsub.s32 0, %v2456
      %v2458 = vrot.slane %v2453, %v2457
      %v2492 = vunpack.c.l.b16 %v2421
      %v2493 = vunpack.c.l.b16 %v2422
      %v2494 = vunpack.c.l.b16 %v2423
      %v2495 = vunpack.c.l.b16 %v2424
      %v2496 = vunpack.c.l.b16 %v2425
      %v2497 = vunpack.c.l.b16 %v2426
      %v2498 = vunpack.c.l.b16 %v2427
      %v2499 = vunpack.c.l.b16 %v2428
      %v2500 = vunpack.c.l.b16 %v2429
      %v2501 = vunpack.c.l.b16 %v2430
      %v2502 = vunpack.c.l.b16 %v2431
      %v2503 = vunpack.c.l.b16 %v2432
      %v2504 = vunpack.c.l.b16 %v2433
      %v2505 = vunpack.c.l.b16 %v2434
      %v2506 = vunpack.c.l.b16 %v2435
      %v2507 = vunpack.c.l.b16 %v2436
      %v2508 = vunpack.c.l.b16 %v2437
      %v2509 = vunpack.c.l.b16 %v2438
      %v2510 = vunpack.c.l.b16 %v2439
      %v2511 = vunpack.c.l.b16 %v2440
      %v2512 = vunpack.c.l.b16 %v2441
      %v2513 = vunpack.c.l.b16 %v2442
      %v2514 = vunpack.c.l.b16 %v2443
      %v2515 = vunpack.c.l.b16 %v2444
      %v2516 = vunpack.c.l.b16 %v2445
      %v2517 = vunpack.c.l.b16 %v2446
      %v2518 = vunpack.c.l.b16 %v2447
      %v2519 = vunpack.c.l.b16 %v2448
      %v2520 = vunpack.c.l.b16 %v2449
      %v2521 = vunpack.c.l.b16 %v2450
      %v2522 = vunpack.c.l.b16 %v2451
      %v2523 = vunpack.c.l.b16 %v2452
      %v2524 = vpack.c.b16 %v2493, %v2492
      %v2525 = vpack.c.b16 %v2495, %v2494
      %v2526 = vpack.c.b16 %v2497, %v2496
      %v2527 = vpack.c.b16 %v2499, %v2498
      %v2528 = vpack.c.b16 %v2501, %v2500
      %v2529 = vpack.c.b16 %v2503, %v2502
      %v2530 = vpack.c.b16 %v2505, %v2504
      %v2531 = vpack.c.b16 %v2507, %v2506
      %v2532 = vpack.c.b16 %v2509, %v2508
      %v2533 = vpack.c.b16 %v2511, %v2510
      %v2534 = vpack.c.b16 %v2513, %v2512
      %v2535 = vpack.c.b16 %v2515, %v2514
      %v2536 = vpack.c.b16 %v2517, %v2516
      %v2537 = vpack.c.b16 %v2519, %v2518
      %v2538 = vpack.c.b16 %v2521, %v2520
      %v2539 = vpack.c.b16 %v2523, %v2522
      %2556 = vmatprep.subr.bf16.mxu0 0
      %2557 = vmatpush1.bf16.msra.mxu0 %v2524
      %2558 = vmatprep.subr.bf16.mxu0 0
      %2559 = vmatpush1.bf16.msra.mxu0 %v2525
      %2560 = vmatprep.subr.bf16.mxu0 0
      %2561 = vmatpush1.bf16.msra.mxu0 %v2526
      %2562 = vmatprep.subr.bf16.mxu0 0
      %2563 = vmatpush1.bf16.msra.mxu0 %v2527
      %2564 = vmatprep.subr.bf16.mxu0 0
      %2565 = vmatpush1.bf16.msra.mxu0 %v2528
      %2566 = vmatprep.subr.bf16.mxu0 0
      %2567 = vmatpush1.bf16.msra.mxu0 %v2529
      %2568 = vmatprep.subr.bf16.mxu0 0
      %2569 = vmatpush1.bf16.msra.mxu0 %v2530
      %2570 = vmatprep.subr.bf16.mxu0 0
      %2571 = vmatpush1.bf16.msra.mxu0 %v2531
      %2572 = vmatprep.subr.bf16.mxu0 0
      %2573 = vmatpush1.bf16.msra.mxu0 %v2532
      %2574 = vmatprep.subr.bf16.mxu0 0
      %2575 = vmatpush1.bf16.msra.mxu0 %v2533
      %2576 = vmatprep.subr.bf16.mxu0 0
      %2577 = vmatpush1.bf16.msra.mxu0 %v2534
      %2578 = vmatprep.subr.bf16.mxu0 0
      %2579 = vmatpush1.bf16.msra.mxu0 %v2535
      %2580 = vmatprep.subr.bf16.mxu0 0
      %2581 = vmatpush1.bf16.msra.mxu0 %v2536
      %2582 = vmatprep.subr.bf16.mxu0 0
      %2583 = vmatpush1.bf16.msra.mxu0 %v2537
      %2584 = vmatprep.subr.bf16.mxu0 0
      %2585 = vmatpush1.bf16.msra.mxu0 %v2538
      %2586 = vmatprep.subr.bf16.mxu0 0
      %2587 = vmatpush1.bf16.msra.mxu0 %v2539
      %2588 = vmatprep.mubr.bf16.mxu0 %v2420
      %2589 = vmatmul.mubr.bf16.gmra.mrb[0].mxu0 %v2419
      %v2590 = vpop.f32.mrb[0].mxu0
      %v2591 = vadd.f32 %v2458, %v2590
      %v2592 = vpop.f32.mrb[0].mxu0
      %v2593 = vpop.f32.mrb[0].mxu0
      %v2594 = vadd.f32 %v2458, %v2593
      %v2595 = vpop.f32.mrb[0].mxu0
      %2596 = vdwg.mxu0
      %v2597 = vmul.f32 %v2591, 0.2
      %v2598 = vmul.f32 %v2594, 0.2
      %v2599 = vmax.f32 %v2591, %v2597
      %v2600 = vmax.f32 %v2594, %v2598
      %v2601 = vld [vmem:[%s7] sm:$0x1]
      %v2603 = vlaneseq
      %v2604 = vshrl.u32 %v2603, 7
      %v2605 = vsub.s32 0, %v2604
      %v2606 = vrot.slane %v2601, %v2605
      %v2608 = vmul.f32 %v2599, %v2606
      %v2609 = vmul.f32 %v2600, %v2606
      %2610 = vadd.xlane.f32.xlu0 %v2608
      %v2611 = vpop.xlane.xlu0 %2610
      %2612 = vadd.xlane.f32.xlu0 %v2609
      %v2613 = vpop.xlane.xlu0 %2612
      %v2614 = vld [vmem:[#allocation2] sm:$0x1]
      %v2616 = vlaneseq
      %v2617 = vshrl.u32 %v2616, 7
      %v2618 = vsub.s32 0, %v2617
      %v2619 = vrot.slane %v2614, %v2618
      %v2621 = vadd.f32 %v2611, %v2619
      %v2622 = vadd.f32 %v2613, %v2619
      %vm2623 = vcmask 7168
      %2624 = vst.msk [vmem:[%s339] sm:$0xff] %vm2623, %v2621
      %2625 = vst.msk [vmem:[%s339 + $0x8] sm:$0xff] %vm2623, %v2622
      %s2626 = smul.u32 2, %s22
      %p2627 = scmp.lt.s32.totalorder %s2626, 3
      %s2628 = scalar_select %p2627, %s2626, 3
      %s2629 = smul.addr %s2628, 8
      %s2630 = scalar_lea.vmem %s9, %s2629
      // Predicated region
      $region57: #{discriminator_forward.1} parent=55 // pred_check
        %p2631 = pneg %p234
      $region58: #{discriminator_forward.1} parent=55 // pred_check_branch
        %2633 = sbr.rel (%p2631) target = $region60
      $region59: #{discriminator_forward.1} parent=55 // pred_region
        %s2634 = smul.u32 2, %s22
      $region60: #{discriminator_forward.1} parent=55 // pred_fallthru
        _
    $region56: #{discriminator_forward.1} parent=5 // pred_fallthru
      _
    %p2635 = scmp.le.s32.totalorder 2, %s17
    // Predicated region
    $region61: #{discriminator_forward.1} parent=5 // pred_check
      %p2636 = pneg %p2635
    $region62: #{discriminator_forward.1} parent=5 // pred_check_branch
      %2638 = sbr.rel (%p2636) target = $region64
    $region63: #{discriminator_forward.1} parent=5 // pred_region
      %s2639 = ssub.s32 %s17, 2
      // Predicated region
      $region65: #{discriminator_forward.1} parent=63 // pred_check
        %p2640 = pneg %p240
      $region66: #{discriminator_forward.1} parent=63 // pred_check_branch
        %2642 = sbr.rel (%p2640) target = $region68
      $region67: #{discriminator_forward.1} parent=63 // pred_region
        %s2643 = smul.u32 2, %s23
        %p2644 = scmp.lt.s32.totalorder %s2643, 3
        %s2645 = scalar_select %p2644, %s2643, 3
        %s2646 = smul.addr %s2645, 8
        %s2647 = scalar_lea.vmem %s9, %s2646
      $region68: #{discriminator_forward.1} parent=63 // pred_fallthru
        _
    $region64: #{discriminator_forward.1} parent=5 // pred_fallthru
      _
  $region6: #{discriminator_forward.1} parent=0 // loop_footer
    %s21 = sadd.s32 1, %s17
  $region7: #{discriminator_forward.1} parent=0 // loop_footer_branch
    %16 = sbr.rel target = $region3
  $region8: #{discriminator_forward.1} parent=0 // loop_exit
    _

</llo_original>
